<compile_context>
chip_gen: v5e
topology: v5e:2x2
jax: 0.10.0
libtpu: 0.0.40
codegen_flags: <defaults>
</compile_context>

<pallas_src>
import math

import jax
import jax.numpy as jnp
from jax.experimental import pallas as pl
from jax.experimental.pallas import tpu as pltpu

INPUT_DIM = 276          # 92 bond lengths + 92 bond angles + 92 dihedrals
HIDDEN_DIM = 50
H_PAD = 128              # hidden dim zero-padded to a full vreg lane width
COV_SCALING_FACTOR = 0.8

# Padded per-head column widths (multiples of 128) and offsets in the fused
# head-weight matrix / output slab.
PAD_276 = 384
PAD_552 = 640
PI_OFF = 0                               # 3 components, each PAD_276 wide
MU_OFF = PI_OFF + 3 * PAD_276            # 1152
SIG_OFF = MU_OFF + PAD_552               # 1792
LOC_OFF = SIG_OFF + PAD_552              # 2432
CONC_OFF = LOC_OFF + PAD_276             # 2816
TOTAL_PAD = CONC_OFF + PAD_276           # 3200


def _round_up(n, m):
    return ((n + m - 1) // m) * m


def _sigmoid(z):
    return 1.0 / (1.0 + jnp.exp(-z))


def _softplus(z):
    # numerically stable softplus (matches torch.nn.Softplus default)
    return jnp.maximum(z, 0.0) + jnp.log1p(jnp.exp(-jnp.abs(z)))


def mdn_kernel(x_ref, w1_ref, b1_ref, wh_ref, bh_ref, out_ref):
    # fc1: Linear + Sigmoid (hidden padded to 128; padded lanes are harmless
    # because the corresponding fused head-weight rows are zero).
    x = x_ref[...].astype(w1_ref.dtype)                               # (TB, 276)
    h = jnp.dot(x, w1_ref[...], preferred_element_type=jnp.float32) + b1_ref[...]
    fc = _sigmoid(h)                                                  # (TB, 128)

    # One fused, lane-dense matmul for all five heads.
    z = jnp.dot(fc.astype(wh_ref.dtype), wh_ref[...],
                preferred_element_type=jnp.float32) + bh_ref[...]     # (TB, 3200)

    # ---- pi head: softmax over the 3 components (pure elementwise, the
    #      component axis was pre-split into three lane-aligned column blocks)
    s0 = z[:, PI_OFF:PI_OFF + PAD_276]
    s1 = z[:, PI_OFF + PAD_276:PI_OFF + 2 * PAD_276]
    s2 = z[:, PI_OFF + 2 * PAD_276:PI_OFF + 3 * PAD_276]
    m = jnp.maximum(jnp.maximum(s0, s1), s2)
    e0 = jnp.exp(s0 - m)
    e1 = jnp.exp(s1 - m)
    e2 = jnp.exp(s2 - m)
    inv = pl.reciprocal(e0 + e1 + e2, approx=False)   # exact; keeps f32 parity
    out_ref[:, PI_OFF:PI_OFF + PAD_276] = e0 * inv
    out_ref[:, PI_OFF + PAD_276:PI_OFF + 2 * PAD_276] = e1 * inv
    out_ref[:, PI_OFF + 2 * PAD_276:PI_OFF + 3 * PAD_276] = e2 * inv

    # ---- mu head (identity) ----
    out_ref[:, MU_OFF:MU_OFF + PAD_552] = z[:, MU_OFF:MU_OFF + PAD_552]

    # ---- sigma head: sigmoid(.) * cov_scaling_factor ----
    out_ref[:, SIG_OFF:SIG_OFF + PAD_552] = (
        _sigmoid(z[:, SIG_OFF:SIG_OFF + PAD_552]) * COV_SCALING_FACTOR)

    # ---- loc head (identity) ----
    out_ref[:, LOC_OFF:LOC_OFF + PAD_276] = z[:, LOC_OFF:LOC_OFF + PAD_276]

    # ---- concentration head: softplus ----
    out_ref[:, CONC_OFF:CONC_OFF + PAD_276] = _softplus(
        z[:, CONC_OFF:CONC_OFF + PAD_276])


def mdn_forward(x, packed_params, *, tile_b=256):
    """Pallas-backed MDN forward.  Returns (pi, mu, sigma, loc, conc) with the
    same shapes / semantics as the PyTorch module:
      pi:    (B, 276, 3)   softmax over the last axis
      mu:    (B, 184, 3)
      sigma: (B, 184, 3)   sigmoid * 0.8
      loc:   (B, 92, 3)
      conc:  (B, 92, 3)    softplus
    """
    B = x.shape[0]
    w1p, b1p, whp, bhp = packed_params

    # Batch tiling: pad B to a multiple of the tile so every block is full.
    tb = int(min(tile_b, _round_up(B, 8)))
    b_pad = _round_up(B, tb)
    if b_pad != B:
        x = jnp.pad(x, ((0, b_pad - B), (0, 0)))
    grid = (b_pad // tb,)

    flops = 2 * b_pad * (INPUT_DIM * H_PAD + H_PAD * TOTAL_PAD)
    transcendentals = b_pad * (H_PAD + 3 * PAD_276 + 2 * PAD_552 + PAD_276)
    bytes_accessed = 4 * (b_pad * INPUT_DIM + b_pad * TOTAL_PAD
                          + INPUT_DIM * H_PAD + H_PAD + H_PAD * TOTAL_PAD + TOTAL_PAD)

    slab = pl.pallas_call(
        mdn_kernel,
        out_shape=jax.ShapeDtypeStruct((b_pad, TOTAL_PAD), jnp.float32),
        grid=grid,
        in_specs=[
            pl.BlockSpec((tb, INPUT_DIM), lambda i: (i, 0)),        # x tile
            pl.BlockSpec((INPUT_DIM, H_PAD), lambda i: (0, 0)),     # w1 (resident)
            pl.BlockSpec((1, H_PAD), lambda i: (0, 0)),             # b1 (resident)
            pl.BlockSpec((H_PAD, TOTAL_PAD), lambda i: (0, 0)),     # fused head W
            pl.BlockSpec((1, TOTAL_PAD), lambda i: (0, 0)),         # fused head b
        ],
        out_specs=pl.BlockSpec((tb, TOTAL_PAD), lambda i: (i, 0)),
        compiler_params=pltpu.CompilerParams(
            dimension_semantics=("parallel",),          # v7x: split batch on 2 TCs
            vmem_limit_bytes=32 * 1024 * 1024,          # fits v5e/v6e/v7x budgets
        ),
        cost_estimate=pl.CostEstimate(
            flops=flops,
            transcendentals=transcendentals,
            bytes_accessed=bytes_accessed,
        ),
    )(x, w1p, b1p, whp, bhp)

    slab = slab[:B]
    # Post-kernel layout plumbing (HBM-side XLA ops, outside kernel time).
    pi = jnp.stack(
        [slab[:, PI_OFF:PI_OFF + 276],
         slab[:, PI_OFF + PAD_276:PI_OFF + PAD_276 + 276],
         slab[:, PI_OFF + 2 * PAD_276:PI_OFF + 2 * PAD_276 + 276]],
        axis=-1)                                               # (B, 276, 3)
    mu = slab[:, MU_OFF:MU_OFF + 552].reshape(B, 184, 3)
    sigma = slab[:, SIG_OFF:SIG_OFF + 552].reshape(B, 184, 3)
    loc = slab[:, LOC_OFF:LOC_OFF + 276].reshape(B, 92, 3)
    conc = slab[:, CONC_OFF:CONC_OFF + 276].reshape(B, 92, 3)
    return pi, mu, sigma, loc, conc


def init_params(key, input_dim=INPUT_DIM, hidden_dim=HIDDEN_DIM):
    """Deterministic parameter init (PyTorch-style uniform ±1/sqrt(fan_in)).
    Returns 'natural' (unpadded, PyTorch column order) parameters."""
    def linear(key, fan_in, fan_out):
        kw, kb = jax.random.split(key)
        bound = 1.0 / math.sqrt(fan_in)
        w = jax.random.uniform(kw, (fan_in, fan_out), jnp.float32, -bound, bound)
        b = jax.random.uniform(kb, (fan_out,), jnp.float32, -bound, bound)
        return w, b

    k1, k2, k3, k4, k5, k6 = jax.random.split(key, 6)
    w1, b1 = linear(k1, input_dim, hidden_dim)
    wpi, bpi = linear(k2, hidden_dim, 828)
    wmu, bmu = linear(k3, hidden_dim, 552)
    wsig, bsig = linear(k4, hidden_dim, 552)
    wloc, bloc = linear(k5, hidden_dim, 276)
    wconc, bconc = linear(k6, hidden_dim, 276)
    return (w1, b1, wpi, bpi, wmu, bmu, wsig, bsig, wloc, bloc, wconc, bconc)


def pack_params(params, compute_dtype=jnp.float32):
    """Pack natural params into the fused, 128-padded kernel layout.
    compute_dtype=jnp.bfloat16 enables native-MXU matmuls on v6e/v7x (biases
    and accumulation stay f32); default f32 for exact PyTorch parity."""
    (w1, b1, wpi, bpi, wmu, bmu, wsig, bsig, wloc, bloc, wconc, bconc) = params
    H = w1.shape[1]

    w1p = jnp.zeros((INPUT_DIM, H_PAD), jnp.float32).at[:, :H].set(w1)
    b1p = jnp.zeros((1, H_PAD), jnp.float32).at[0, :H].set(b1)

    wh = jnp.zeros((H_PAD, TOTAL_PAD), jnp.float32)
    bh = jnp.zeros((1, TOTAL_PAD), jnp.float32)

    # pi: split PyTorch's interleaved 828 columns (col = g*3 + c) into three
    # component-major, lane-aligned 276-wide blocks.
    for c in range(3):
        off = PI_OFF + c * PAD_276
        wh = wh.at[:H, off:off + 276].set(wpi[:, c::3])
        bh = bh.at[0, off:off + 276].set(bpi[c::3])

    wh = wh.at[:H, MU_OFF:MU_OFF + 552].set(wmu)
    bh = bh.at[0, MU_OFF:MU_OFF + 552].set(bmu)
    wh = wh.at[:H, SIG_OFF:SIG_OFF + 552].set(wsig)
    bh = bh.at[0, SIG_OFF:SIG_OFF + 552].set(bsig)
    wh = wh.at[:H, LOC_OFF:LOC_OFF + 276].set(wloc)
    bh = bh.at[0, LOC_OFF:LOC_OFF + 276].set(bloc)
    wh = wh.at[:H, CONC_OFF:CONC_OFF + 276].set(wconc)
    bh = bh.at[0, CONC_OFF:CONC_OFF + 276].set(bconc)

    return (w1p.astype(compute_dtype), b1p, wh.astype(compute_dtype), bh)


def mdn_forward_ref(x, params):
    """Plain-JAX reference for correctness checking (PyTorch semantics)."""
    (w1, b1, wpi, bpi, wmu, bmu, wsig, bsig, wloc, bloc, wconc, bconc) = params
    B = x.shape[0]
    fc = jax.nn.sigmoid(x @ w1 + b1)
    pi = jax.nn.softmax((fc @ wpi + bpi).reshape(B, 276, 3), axis=-1)
    mu = (fc @ wmu + bmu).reshape(B, 184, 3)
    sigma = (jax.nn.sigmoid(fc @ wsig + bsig) * COV_SCALING_FACTOR).reshape(B, 184, 3)
    loc = (fc @ wloc + bloc).reshape(B, 92, 3)
    conc = jax.nn.softplus(fc @ wconc + bconc).reshape(B, 92, 3)
    return pi, mu, sigma, loc, conc


if __name__ == "__main__":
    key = jax.random.PRNGKey(0)
    kp, kx = jax.random.split(key)
    params = init_params(kp)
    packed = pack_params(params)          # f32 compute for exact parity

    # Small single-tile case.
    batch = 8
    x = jax.random.uniform(kx, (batch, INPUT_DIM), jnp.float32, 0.0001, 0.9999)
    outs = jax.block_until_ready(mdn_forward(x, packed))
    ref = mdn_forward_ref(x, params)
    for o, r in zip(outs, ref):
        assert o.shape == r.shape
        assert jnp.allclose(o, r, atol=2e-5, rtol=2e-5), "kernel mismatch vs reference"

    # Multi-tile case (grid > 1, batch not a multiple of the tile) to exercise
    # the batch grid + padding path with small shapes.
    x2 = jax.random.uniform(jax.random.PRNGKey(1), (20, INPUT_DIM),
                            jnp.float32, 0.0001, 0.9999)
    outs2 = jax.block_until_ready(mdn_forward(x2, packed, tile_b=8))
    ref2 = mdn_forward_ref(x2, params)
    for o, r in zip(outs2, ref2):
        assert o.shape == r.shape
        assert jnp.allclose(o, r, atol=2e-5, rtol=2e-5), "kernel mismatch vs reference"

    print("KERNEL_OK")
</pallas_src>

<mosaic_0001>
module attributes {stable_mosaic.version = 11 : i64} {
  func.func @mdn_kernel(%arg0: i32, %arg1: memref<8x276xf32, #tpu.memory_space<vmem>>, %arg2: memref<276x128xf32, #tpu.memory_space<vmem>>, %arg3: memref<1x128xf32, #tpu.memory_space<vmem>>, %arg4: memref<128x3200xf32, #tpu.memory_space<vmem>>, %arg5: memref<1x3200xf32, #tpu.memory_space<vmem>>, %arg6: memref<8x3200xf32, #tpu.memory_space<vmem>>) attributes {dimension_semantics = [#tpu.dimension_semantics<parallel>], iteration_bounds = array<i64: 1>, scalar_prefetch = 0 : i64, scratch_operands = 0 : i64, tpu.core_type = #tpu.core_type<tc>, window_params = [{transform_indices = @transform_0, window_bounds = array<i64: 8, 276>}, {pipeline_mode = #tpu.pipeline_mode<synchronous>, transform_indices = @transform_1, window_bounds = array<i64: 276, 128>}, {pipeline_mode = #tpu.pipeline_mode<synchronous>, transform_indices = @transform_2, window_bounds = array<i64: 1, 128>}, {pipeline_mode = #tpu.pipeline_mode<synchronous>, transform_indices = @transform_3, window_bounds = array<i64: 128, 3200>}, {pipeline_mode = #tpu.pipeline_mode<synchronous>, transform_indices = @transform_4, window_bounds = array<i64: 1, 3200>}, {transform_indices = @transform_5, window_bounds = array<i64: 8, 3200>}]} {
    %c0 = arith.constant 0 : index
    %c0_0 = arith.constant 0 : index
    %0 = vector.load %arg1[%c0, %c0_0] : memref<8x276xf32, #tpu.memory_space<vmem>>, vector<8x276xf32>
    %c0_1 = arith.constant 0 : index
    %c0_2 = arith.constant 0 : index
    %1 = vector.load %arg2[%c0_1, %c0_2] : memref<276x128xf32, #tpu.memory_space<vmem>>, vector<276x128xf32>
    %cst = arith.constant dense<0.000000e+00> : vector<8x128xf32>
    %2 = tpu.matmul %0, %1, %cst {dimension_numbers = #tpu.dot_dimension_numbers<[1], [0], [0], [1], [0, 0, 1, 1], [], []>} : vector<8x276xf32>, vector<276x128xf32>, vector<8x128xf32> -> vector<8x128xf32>
    %c0_3 = arith.constant 0 : index
    %c0_4 = arith.constant 0 : index
    %3 = vector.load %arg3[%c0_3, %c0_4] : memref<1x128xf32, #tpu.memory_space<vmem>>, vector<1x128xf32>
    %4 = vector.broadcast %3 : vector<1x128xf32> to vector<8x128xf32>
    %5 = arith.addf %2, %4 : vector<8x128xf32>
    %cst_5 = arith.constant 0.000000e+00 : f32
    %6 = vector.broadcast %cst_5 : f32 to vector<8x128xf32>
    %7 = arith.subf %6, %5 : vector<8x128xf32>
    %8 = math.exp %7 : vector<8x128xf32>
    %cst_6 = arith.constant 1.000000e+00 : f32
    %9 = vector.broadcast %cst_6 : f32 to vector<8x128xf32>
    %10 = arith.addf %9, %8 : vector<8x128xf32>
    %cst_7 = arith.constant 1.000000e+00 : f32
    %11 = vector.broadcast %cst_7 : f32 to vector<8x128xf32>
    %12 = arith.divf %11, %10 : vector<8x128xf32>
    %c0_8 = arith.constant 0 : index
    %c0_9 = arith.constant 0 : index
    %13 = vector.load %arg4[%c0_8, %c0_9] : memref<128x3200xf32, #tpu.memory_space<vmem>>, vector<128x3200xf32>
    %cst_10 = arith.constant dense<0.000000e+00> : vector<8x3200xf32>
    %14 = tpu.matmul %12, %13, %cst_10 {dimension_numbers = #tpu.dot_dimension_numbers<[1], [0], [0], [1], [0, 0, 1, 1], [], []>} : vector<8x128xf32>, vector<128x3200xf32>, vector<8x3200xf32> -> vector<8x3200xf32>
    %c0_11 = arith.constant 0 : index
    %c0_12 = arith.constant 0 : index
    %15 = vector.load %arg5[%c0_11, %c0_12] : memref<1x3200xf32, #tpu.memory_space<vmem>>, vector<1x3200xf32>
    %16 = vector.broadcast %15 : vector<1x3200xf32> to vector<8x3200xf32>
    %17 = arith.addf %14, %16 : vector<8x3200xf32>
    %18 = vector.extract_strided_slice %17 {offsets = [0, 0], sizes = [8, 384], strides = [1, 1]} : vector<8x3200xf32> to vector<8x384xf32>
    %19 = vector.extract_strided_slice %17 {offsets = [0, 384], sizes = [8, 384], strides = [1, 1]} : vector<8x3200xf32> to vector<8x384xf32>
    %20 = vector.extract_strided_slice %17 {offsets = [0, 768], sizes = [8, 384], strides = [1, 1]} : vector<8x3200xf32> to vector<8x384xf32>
    %21 = arith.maximumf %18, %19 : vector<8x384xf32>
    %22 = arith.maximumf %21, %20 : vector<8x384xf32>
    %23 = arith.subf %18, %22 : vector<8x384xf32>
    %24 = math.exp %23 : vector<8x384xf32>
    %25 = arith.subf %19, %22 : vector<8x384xf32>
    %26 = math.exp %25 : vector<8x384xf32>
    %27 = arith.subf %20, %22 : vector<8x384xf32>
    %28 = math.exp %27 : vector<8x384xf32>
    %29 = arith.addf %24, %26 : vector<8x384xf32>
    %30 = arith.addf %29, %28 : vector<8x384xf32>
    %31 = tpu.reciprocal %30 : vector<8x384xf32> -> vector<8x384xf32>
    %32 = arith.mulf %24, %31 : vector<8x384xf32>
    %c0_13 = arith.constant 0 : index
    %c0_14 = arith.constant 0 : index
    %33 = vector.load %arg6[%c0_13, %c0_14] : memref<8x3200xf32, #tpu.memory_space<vmem>>, vector<8x384xf32>
    tpu.vector_store %arg6[%c0_13, %c0_14], %32 {strides = array<i32>} : memref<8x3200xf32, #tpu.memory_space<vmem>>, vector<8x384xf32>,
    %34 = arith.mulf %26, %31 : vector<8x384xf32>
    %c0_15 = arith.constant 0 : index
    %c384 = arith.constant 384 : index
    %35 = vector.load %arg6[%c0_15, %c384] : memref<8x3200xf32, #tpu.memory_space<vmem>>, vector<8x384xf32>
    tpu.vector_store %arg6[%c0_15, %c384], %34 {strides = array<i32>} : memref<8x3200xf32, #tpu.memory_space<vmem>>, vector<8x384xf32>,
    %36 = arith.mulf %28, %31 : vector<8x384xf32>
    %c0_16 = arith.constant 0 : index
    %c768 = arith.constant 768 : index
    %37 = vector.load %arg6[%c0_16, %c768] : memref<8x3200xf32, #tpu.memory_space<vmem>>, vector<8x384xf32>
    tpu.vector_store %arg6[%c0_16, %c768], %36 {strides = array<i32>} : memref<8x3200xf32, #tpu.memory_space<vmem>>, vector<8x384xf32>,
    %38 = vector.extract_strided_slice %17 {offsets = [0, 1152], sizes = [8, 640], strides = [1, 1]} : vector<8x3200xf32> to vector<8x640xf32>
    %c0_17 = arith.constant 0 : index
    %c1152 = arith.constant 1152 : index
    %39 = vector.load %arg6[%c0_17, %c1152] : memref<8x3200xf32, #tpu.memory_space<vmem>>, vector<8x640xf32>
    tpu.vector_store %arg6[%c0_17, %c1152], %38 {strides = array<i32>} : memref<8x3200xf32, #tpu.memory_space<vmem>>, vector<8x640xf32>,
    %40 = vector.extract_strided_slice %17 {offsets = [0, 1792], sizes = [8, 640], strides = [1, 1]} : vector<8x3200xf32> to vector<8x640xf32>
    %cst_18 = arith.constant 0.000000e+00 : f32
    %41 = vector.broadcast %cst_18 : f32 to vector<8x640xf32>
    %42 = arith.subf %41, %40 : vector<8x640xf32>
    %43 = math.exp %42 : vector<8x640xf32>
    %cst_19 = arith.constant 1.000000e+00 : f32
    %44 = vector.broadcast %cst_19 : f32 to vector<8x640xf32>
    %45 = arith.addf %44, %43 : vector<8x640xf32>
    %cst_20 = arith.constant 1.000000e+00 : f32
    %46 = vector.broadcast %cst_20 : f32 to vector<8x640xf32>
    %47 = arith.divf %46, %45 : vector<8x640xf32>
    %cst_21 = arith.constant 8.000000e-01 : f32
    %48 = vector.broadcast %cst_21 : f32 to vector<8x640xf32>
    %49 = arith.mulf %47, %48 : vector<8x640xf32>
    %c0_22 = arith.constant 0 : index
    %c1792 = arith.constant 1792 : index
    %50 = vector.load %arg6[%c0_22, %c1792] : memref<8x3200xf32, #tpu.memory_space<vmem>>, vector<8x640xf32>
    tpu.vector_store %arg6[%c0_22, %c1792], %49 {strides = array<i32>} : memref<8x3200xf32, #tpu.memory_space<vmem>>, vector<8x640xf32>,
    %51 = vector.extract_strided_slice %17 {offsets = [0, 2432], sizes = [8, 384], strides = [1, 1]} : vector<8x3200xf32> to vector<8x384xf32>
    %c0_23 = arith.constant 0 : index
    %c2432 = arith.constant 2432 : index
    %52 = vector.load %arg6[%c0_23, %c2432] : memref<8x3200xf32, #tpu.memory_space<vmem>>, vector<8x384xf32>
    tpu.vector_store %arg6[%c0_23, %c2432], %51 {strides = array<i32>} : memref<8x3200xf32, #tpu.memory_space<vmem>>, vector<8x384xf32>,
    %53 = vector.extract_strided_slice %17 {offsets = [0, 2816], sizes = [8, 384], strides = [1, 1]} : vector<8x3200xf32> to vector<8x384xf32>
    %cst_24 = arith.constant 0.000000e+00 : f32
    %54 = vector.broadcast %cst_24 : f32 to vector<8x384xf32>
    %55 = arith.maximumf %53, %54 : vector<8x384xf32>
    %56 = math.absf %53 : vector<8x384xf32>
    %cst_25 = arith.constant 0.000000e+00 : f32
    %57 = vector.broadcast %cst_25 : f32 to vector<8x384xf32>
    %58 = arith.subf %57, %56 : vector<8x384xf32>
    %59 = math.exp %58 : vector<8x384xf32>
    %60 = math.log1p %59 : vector<8x384xf32>
    %61 = arith.addf %55, %60 : vector<8x384xf32>
    %c0_26 = arith.constant 0 : index
    %c2816 = arith.constant 2816 : index
    %62 = vector.load %arg6[%c0_26, %c2816] : memref<8x3200xf32, #tpu.memory_space<vmem>>, vector<8x384xf32>
    tpu.vector_store %arg6[%c0_26, %c2816], %61 {strides = array<i32>} : memref<8x3200xf32, #tpu.memory_space<vmem>>, vector<8x384xf32>,
    return
  }
  func.func @transform_0(%arg0: i32) -> (i32, i32) {
    %c0_i32 = arith.constant 0 : i32
    %c0_i32_0 = arith.constant 0 : i32
    return %arg0, %c0_i32 : i32, i32
  }
  func.func @transform_1(%arg0: i32) -> (i32, i32) {
    %c0_i32 = arith.constant 0 : i32
    %c0_i32_0 = arith.constant 0 : i32
    %c0_i32_1 = arith.constant 0 : i32
    return %c0_i32, %c0_i32_0 : i32, i32
  }
  func.func @transform_2(%arg0: i32) -> (i32, i32) {
    %c0_i32 = arith.constant 0 : i32
    %c0_i32_0 = arith.constant 0 : i32
    %c0_i32_1 = arith.constant 0 : i32
    return %c0_i32, %c0_i32_0 : i32, i32
  }
  func.func @transform_3(%arg0: i32) -> (i32, i32) {
    %c0_i32 = arith.constant 0 : i32
    %c0_i32_0 = arith.constant 0 : i32
    %c0_i32_1 = arith.constant 0 : i32
    return %c0_i32, %c0_i32_0 : i32, i32
  }
  func.func @transform_4(%arg0: i32) -> (i32, i32) {
    %c0_i32 = arith.constant 0 : i32
    %c0_i32_0 = arith.constant 0 : i32
    %c0_i32_1 = arith.constant 0 : i32
    return %c0_i32, %c0_i32_0 : i32, i32
  }
  func.func @transform_5(%arg0: i32) -> (i32, i32) {
    %c0_i32 = arith.constant 0 : i32
    %c0_i32_0 = arith.constant 0 : i32
    return %arg0, %c0_i32 : i32, i32
  }
}

</mosaic_0001>

<llo_original>
// kernel: tpu_custom_call.1
$region0: #{tpu_custom_call.1}
  #allocation0 [shape = 'u32[]', space=smem, size = 0x4, offset = 0x4, fixed_abs, tag = 'smem constant byte address 0x4 - core index']
  #allocation1 [shape = 'u32[72,128]{1,0:T(1,128)}', space=vmem, size = 0x9000, scoped, tag = 'internal scratch']
  %s0 = inlined_call_operand.hbm [shape: f32[8,276], index: 0, kind: input, shape index: {}]
  %s1 = inlined_call_operand.hbm [shape: f32[276,128], index: 1, kind: input, shape index: {}]
  %s2 = inlined_call_operand.hbm [shape: f32[1,128], index: 2, kind: input, shape index: {}]
  %s3 = inlined_call_operand.hbm [shape: f32[128,3200], index: 3, kind: input, shape index: {}]
  %s4 = inlined_call_operand.hbm [shape: f32[1,3200], index: 4, kind: input, shape index: {}]
  %s5 = inlined_call_operand.hbm [shape: f32[8,3200], index: 5, kind: output, shape index: {}]
  %s6 = sld [smem:[#allocation0]]
  $region50: #{tpu_custom_call.1} parent=0
    _
  %s8 = ssub.s32 1, %s6
  %s9 = scalar_select 0, %s8, %s6
  $region1: #{tpu_custom_call.1} parent=0
    #allocation2 [shape = 'u8[12288]{0}', space=vmem, size = 0x3000, scoped, tag = 'input window, operand 0, single buffered']
    #allocation3 [shape = 's32[1]{0}', space=sflag, size = 0x4, scoped, tag = 'scoped memory for tpu_custom_call.1']
    #allocation4 [shape = 's32[1]{0}', space=sflag, size = 0x4, scoped, tag = 'scoped memory for tpu_custom_call.1']
    #allocation5 [shape = 'u8[143360]{0}', space=vmem, size = 0x23000, scoped, tag = 'input window, operand 1, single buffered']
    #allocation6 [shape = 's32[1]{0}', space=sflag, size = 0x4, scoped, tag = 'scoped memory for tpu_custom_call.1']
    #allocation7 [shape = 'u8[512]{0}', space=vmem, size = 0x400, scoped, tag = 'input window, operand 2, single buffered']
    #allocation8 [shape = 'u8[1638400]{0}', space=vmem, size = 0x190000, scoped, tag = 'input window, operand 3, single buffered']
    #allocation9 [shape = 's32[1]{0}', space=sflag, size = 0x4, scoped, tag = 'scoped memory for tpu_custom_call.1']
    #allocation10 [shape = 'u8[12800]{0}', space=vmem, size = 0x3400, scoped, tag = 'input window, operand 4, single buffered']
    #allocation11 [shape = 'u8[102400]{0}', space=vmem, size = 0x19000, scoped, tag = 'output window, operand 0, single buffered']
    %10 = vsyncpa [#allocation3], 0
    %11 = vsyncpa [#allocation6], 0
    %12 = vsyncpa [#allocation9], 0
    %13 = vsyncpa [#allocation4], 0
    // Predicated region
    $region2: #{tpu_custom_call.1} parent=1 // pred_check
      _
    $region3: #{tpu_custom_call.1} parent=1 // pred_check_branch
      %15 = sbr.rel (0) target = $region5
    $region4: #{tpu_custom_call.1} parent=1 // pred_region
      %17 = vsyncadd [#allocation3], 0
      %s19 = sshll.u32 %s0, 4
      %s20 = int_to_ptr.hbm [resolvable:$true] %s19
      %s21 = sshll.u32 [#allocation2], 4
      %s22 = int_to_ptr.vmem [resolvable:$true] %s21
      %24 = dma.hbm_to_vmem [thread:$0]  %s20, 384, %s22, [#allocation3]
    $region5: #{tpu_custom_call.1} parent=1 // pred_fallthru
      _
    // Predicated region
    $region6: #{tpu_custom_call.1} parent=1 // pred_check
      _
    $region7: #{tpu_custom_call.1} parent=1 // pred_check_branch
      %26 = sbr.rel (0) target = $region9
    $region8: #{tpu_custom_call.1} parent=1 // pred_region
      %28 = vsyncadd [#allocation6], 0
      %s29 = sshll.u32 %s1, 4
      %s30 = int_to_ptr.hbm [resolvable:$true] %s29
      %s31 = sshll.u32 [#allocation5], 4
      %s32 = int_to_ptr.vmem [resolvable:$true] %s31
      %37 = dma.hbm_to_vmem [thread:$0]  %s30, 4480, %s32, [#allocation6], 128, 128, 8
    $region9: #{tpu_custom_call.1} parent=1 // pred_fallthru
      _
    // Predicated region
    $region10: #{tpu_custom_call.1} parent=1 // pred_check
      _
    $region11: #{tpu_custom_call.1} parent=1 // pred_check_branch
      %39 = sbr.rel (0) target = $region13
    $region12: #{tpu_custom_call.1} parent=1 // pred_region
      %41 = vsyncadd [#allocation6], 0
      %s43 = sshll.u32 %s2, 4
      %s44 = int_to_ptr.hbm [resolvable:$true] %s43
      %s45 = sshll.u32 [#allocation7], 4
      %s46 = int_to_ptr.vmem [resolvable:$true] %s45
      %48 = dma.hbm_to_vmem [thread:$0]  %s44, 16, %s46, [#allocation6]
    $region13: #{tpu_custom_call.1} parent=1 // pred_fallthru
      _
    // Predicated region
    $region14: #{tpu_custom_call.1} parent=1 // pred_check
      _
    $region15: #{tpu_custom_call.1} parent=1 // pred_check_branch
      %50 = sbr.rel (0) target = $region17
    $region16: #{tpu_custom_call.1} parent=1 // pred_region
      %52 = vsyncadd [#allocation9], 0
      %s53 = sshll.u32 %s3, 4
      %s54 = int_to_ptr.hbm [resolvable:$true] %s53
      %s55 = sshll.u32 [#allocation8], 4
      %s56 = int_to_ptr.vmem [resolvable:$true] %s55
      %61 = dma.hbm_to_vmem [thread:$0]  %s54, 51200, %s56, [#allocation9], 3200, 3200, 200
    $region17: #{tpu_custom_call.1} parent=1 // pred_fallthru
      _
    // Predicated region
    $region18: #{tpu_custom_call.1} parent=1 // pred_check
      _
    $region19: #{tpu_custom_call.1} parent=1 // pred_check_branch
      %63 = sbr.rel (0) target = $region21
    $region20: #{tpu_custom_call.1} parent=1 // pred_region
      %65 = vsyncadd [#allocation9], 0
      %s67 = sshll.u32 %s4, 4
      %s68 = int_to_ptr.hbm [resolvable:$true] %s67
      %s69 = sshll.u32 [#allocation10], 4
      %s70 = int_to_ptr.vmem [resolvable:$true] %s69
      %72 = dma.hbm_to_vmem [thread:$0]  %s68, 400, %s70, [#allocation9]
    $region21: #{tpu_custom_call.1} parent=1 // pred_fallthru
      _
    // Predicated region
    $region22: #{tpu_custom_call.1} parent=1 // pred_check
      _
    $region23: #{tpu_custom_call.1} parent=1 // pred_check_branch
      %74 = sbr.rel (0) target = $region25
    $region24: #{tpu_custom_call.1} parent=1 // pred_region
      %76 = dma.done [#allocation3], 384
    $region25: #{tpu_custom_call.1} parent=1 // pred_fallthru
      _
    // Predicated region
    $region26: #{tpu_custom_call.1} parent=1 // pred_check
      _
    $region27: #{tpu_custom_call.1} parent=1 // pred_check_branch
      %78 = sbr.rel (0) target = $region29
    $region28: #{tpu_custom_call.1} parent=1 // pred_region
      %80 = dma.done [#allocation6], 4480
    $region29: #{tpu_custom_call.1} parent=1 // pred_fallthru
      _
    // Predicated region
    $region30: #{tpu_custom_call.1} parent=1 // pred_check
      _
    $region31: #{tpu_custom_call.1} parent=1 // pred_check_branch
      %82 = sbr.rel (0) target = $region33
    $region32: #{tpu_custom_call.1} parent=1 // pred_region
      %84 = dma.done [#allocation6], 16
    $region33: #{tpu_custom_call.1} parent=1 // pred_fallthru
      _
    // Predicated region
    $region34: #{tpu_custom_call.1} parent=1 // pred_check
      _
    $region35: #{tpu_custom_call.1} parent=1 // pred_check_branch
      %86 = sbr.rel (0) target = $region37
    $region36: #{tpu_custom_call.1} parent=1 // pred_region
      %88 = dma.done [#allocation9], 51200
    $region37: #{tpu_custom_call.1} parent=1 // pred_fallthru
      _
    // Predicated region
    $region38: #{tpu_custom_call.1} parent=1 // pred_check
      _
    $region39: #{tpu_custom_call.1} parent=1 // pred_check_branch
      %90 = sbr.rel (0) target = $region41
    $region40: #{tpu_custom_call.1} parent=1 // pred_region
      %92 = dma.done [#allocation9], 400
    $region41: #{tpu_custom_call.1} parent=1 // pred_fallthru
      _
    %v93 = vld [vmem:[#allocation2] sm:$0xff]
    %v94 = vld [vmem:[#allocation2 + $0x8] sm:$0xff]
    %v95 = vld [vmem:[#allocation2 + $0x10] sm:$0xff]
    %v96 = vld [vmem:[#allocation5] sm:$0xff]
    %v97 = vld [vmem:[#allocation5 + $0x8] sm:$0xff]
    %v98 = vld [vmem:[#allocation5 + $0x10] sm:$0xff]
    %v99 = vld [vmem:[#allocation5 + $0x18] sm:$0xff]
    %v100 = vld [vmem:[#allocation5 + $0x20] sm:$0xff]
    %v101 = vld [vmem:[#allocation5 + $0x28] sm:$0xff]
    %v102 = vld [vmem:[#allocation5 + $0x30] sm:$0xff]
    %v103 = vld [vmem:[#allocation5 + $0x38] sm:$0xff]
    %v104 = vld [vmem:[#allocation5 + $0x40] sm:$0xff]
    %v105 = vld [vmem:[#allocation5 + $0x48] sm:$0xff]
    %v106 = vld [vmem:[#allocation5 + $0x50] sm:$0xff]
    %v107 = vld [vmem:[#allocation5 + $0x58] sm:$0xff]
    %v108 = vld [vmem:[#allocation5 + $0x60] sm:$0xff]
    %v109 = vld [vmem:[#allocation5 + $0x68] sm:$0xff]
    %v110 = vld [vmem:[#allocation5 + $0x70] sm:$0xff]
    %v111 = vld [vmem:[#allocation5 + $0x78] sm:$0xff]
    %v112 = vld [vmem:[#allocation5 + $0x80] sm:$0xff]
    %v113 = vld [vmem:[#allocation5 + $0x88] sm:$0xff]
    %v114 = vld [vmem:[#allocation5 + $0x90] sm:$0xff]
    %v115 = vld [vmem:[#allocation5 + $0x98] sm:$0xff]
    %v116 = vld [vmem:[#allocation5 + $0xa0] sm:$0xff]
    %v117 = vld [vmem:[#allocation5 + $0xa8] sm:$0xff]
    %v118 = vld [vmem:[#allocation5 + $0xb0] sm:$0xff]
    %v119 = vld [vmem:[#allocation5 + $0xb8] sm:$0xff]
    %v120 = vld [vmem:[#allocation5 + $0xc0] sm:$0xff]
    %v121 = vld [vmem:[#allocation5 + $0xc8] sm:$0xff]
    %v122 = vld [vmem:[#allocation5 + $0xd0] sm:$0xff]
    %v123 = vld [vmem:[#allocation5 + $0xd8] sm:$0xff]
    %v124 = vld [vmem:[#allocation5 + $0xe0] sm:$0xff]
    %v125 = vld [vmem:[#allocation5 + $0xe8] sm:$0xff]
    %v126 = vld [vmem:[#allocation5 + $0xf0] sm:$0xff]
    %v127 = vld [vmem:[#allocation5 + $0xf8] sm:$0xff]
    %v128 = vld [vmem:[#allocation5 + $0x100] sm:$0xff]
    %v129 = vld [vmem:[#allocation5 + $0x108] sm:$0xff]
    %v130 = vld [vmem:[#allocation5 + $0x110] sm:$0xf]
    %v131 = vld [vmem:[#allocation7] sm:$0x1]
    %v133 = vperm.slane %v131, 0
    %vm135 = vcmask 162816
    %v137 = vsel %vm135, %v95, 0
    %vm139 = vcmask 1043456
    %v141 = vsel %vm139, %v130, 0
    %143 = vmatpush.msra.mxu0 %v111
    %144 = vmatpush.msra.mxu0 %v110
    %145 = vmatpush.msra.mxu0 %v109
    %146 = vmatpush.msra.mxu0 %v108
    %147 = vmatpush.msra.mxu0 %v107
    %148 = vmatpush.msra.mxu0 %v106
    %149 = vmatpush.msra.mxu0 %v105
    %150 = vmatpush.msra.mxu0 %v104
    %151 = vmatpush.msra.mxu0 %v103
    %152 = vmatpush.msra.mxu0 %v102
    %153 = vmatpush.msra.mxu0 %v101
    %154 = vmatpush.msra.mxu0 %v100
    %155 = vmatpush.msra.mxu0 %v99
    %156 = vmatpush.msra.mxu0 %v98
    %157 = vmatpush.msra.mxu0 %v97
    %158 = vmatpush.msra.mxu0 %v96
    %159 = vmatmul.f32.gmra.mxu0 %v93
    %v160 = vpop.f32.mrf.mxu0
    %v161 = vadd.f32 %v133, %v160
    %162 = vdwg.mxu0
    %163 = vmatpush.msra.mxu0 %v127
    %164 = vmatpush.msra.mxu0 %v126
    %165 = vmatpush.msra.mxu0 %v125
    %166 = vmatpush.msra.mxu0 %v124
    %167 = vmatpush.msra.mxu0 %v123
    %168 = vmatpush.msra.mxu0 %v122
    %169 = vmatpush.msra.mxu0 %v121
    %170 = vmatpush.msra.mxu0 %v120
    %171 = vmatpush.msra.mxu0 %v119
    %172 = vmatpush.msra.mxu0 %v118
    %173 = vmatpush.msra.mxu0 %v117
    %174 = vmatpush.msra.mxu0 %v116
    %175 = vmatpush.msra.mxu0 %v115
    %176 = vmatpush.msra.mxu0 %v114
    %177 = vmatpush.msra.mxu0 %v113
    %178 = vmatpush.msra.mxu0 %v112
    %179 = vmatmul.f32.gmra.mxu0 %v94
    %v180 = vpop.f32.mrf.mxu0
    %v181 = vadd.f32 %v161, %v180
    %182 = vdwg.mxu0
    %183 = vmatpush.msra.mxu0 0.0
    %184 = vmatpush.msra.mxu0 0.0
    %185 = vmatpush.msra.mxu0 0.0
    %186 = vmatpush.msra.mxu0 0.0
    %187 = vmatpush.msra.mxu0 0.0
    %188 = vmatpush.msra.mxu0 0.0
    %189 = vmatpush.msra.mxu0 0.0
    %190 = vmatpush.msra.mxu0 0.0
    %191 = vmatpush.msra.mxu0 0.0
    %192 = vmatpush.msra.mxu0 0.0
    %193 = vmatpush.msra.mxu0 0.0
    %194 = vmatpush.msra.mxu0 0.0
    %195 = vmatpush.msra.mxu0 0.0
    %196 = vmatpush.msra.mxu0 %v141
    %197 = vmatpush.msra.mxu0 %v129
    %198 = vmatpush.msra.mxu0 %v128
    %199 = vmatmul.f32.gmra.mxu0 %v137
    %v200 = vpop.f32.mrf.mxu0
    %v201 = vadd.f32 %v181, %v200
    %202 = vdwg.mxu0
    %v203 = vsub.f32 0.0, %v201
    %v204 = vmul.f32 %v203, 1.442695
    %v205 = vpow.pop %v204
    %v206 = vadd.f32 %v205, 1.0
    %v207 = vrcp.pop %v206
    %v208 = vmul.f32 %v206, %v207
    %v209 = vsub.f32 1.0, %v208
    %v210 = vmul.f32 %v207, %v209
    %v211 = vadd.f32 %v207, %v210
    %vm212 = vweird.f32 %v206
    %vm213 = vweird.f32 %v207
    %vm214 = vmor %vm212, %vm213
    %v215 = vsel %vm214, %v207, %v211
    %v216 = vand.u32 2147483647, %v206
    %vm217 = vcmp.eq.f32.partialorder %v216, 8.507059e+37
    %v218 = vand.u32 %v206, 2147483648
    %v219 = vor.u32 1.1754944e-38, %v218
    %v220 = vsel %vm217, %v219, %v215
    %v221 = vmul.f32 1.0, %v220
    %v222 = vld [vmem:[#allocation8] sm:$0xff]
    %v223 = vld [vmem:[#allocation8 + $0x8] sm:$0xff]
    %v224 = vld [vmem:[#allocation8 + $0x10] sm:$0xff]
    %v225 = vld [vmem:[#allocation8 + $0x18] sm:$0xff]
    %v226 = vld [vmem:[#allocation8 + $0x20] sm:$0xff]
    %v227 = vld [vmem:[#allocation8 + $0x28] sm:$0xff]
    %v228 = vld [vmem:[#allocation8 + $0x30] sm:$0xff]
    %v229 = vld [vmem:[#allocation8 + $0x38] sm:$0xff]
    %v230 = vld [vmem:[#allocation8 + $0x40] sm:$0xff]
    %v231 = vld [vmem:[#allocation8 + $0x48] sm:$0xff]
    %v232 = vld [vmem:[#allocation8 + $0x50] sm:$0xff]
    %v233 = vld [vmem:[#allocation8 + $0x58] sm:$0xff]
    %v234 = vld [vmem:[#allocation8 + $0x60] sm:$0xff]
    %v235 = vld [vmem:[#allocation8 + $0x68] sm:$0xff]
    %v236 = vld [vmem:[#allocation8 + $0x70] sm:$0xff]
    %v237 = vld [vmem:[#allocation8 + $0x78] sm:$0xff]
    %v238 = vld [vmem:[#allocation8 + $0x80] sm:$0xff]
    %v239 = vld [vmem:[#allocation8 + $0x88] sm:$0xff]
    %v240 = vld [vmem:[#allocation8 + $0x90] sm:$0xff]
    %v241 = vld [vmem:[#allocation8 + $0x98] sm:$0xff]
    %v242 = vld [vmem:[#allocation8 + $0xa0] sm:$0xff]
    %v243 = vld [vmem:[#allocation8 + $0xa8] sm:$0xff]
    %v244 = vld [vmem:[#allocation8 + $0xb0] sm:$0xff]
    %v245 = vld [vmem:[#allocation8 + $0xb8] sm:$0xff]
    %v246 = vld [vmem:[#allocation8 + $0xc0] sm:$0xff]
    %v247 = vld [vmem:[#allocation8 + $0xc8] sm:$0xff]
    %v248 = vld [vmem:[#allocation8 + $0xd0] sm:$0xff]
    %v249 = vld [vmem:[#allocation8 + $0xd8] sm:$0xff]
    %v250 = vld [vmem:[#allocation8 + $0xe0] sm:$0xff]
    %v251 = vld [vmem:[#allocation8 + $0xe8] sm:$0xff]
    %v252 = vld [vmem:[#allocation8 + $0xf0] sm:$0xff]
    %v253 = vld [vmem:[#allocation8 + $0xf8] sm:$0xff]
    %v254 = vld [vmem:[#allocation8 + $0x100] sm:$0xff]
    %v255 = vld [vmem:[#allocation8 + $0x108] sm:$0xff]
    %v256 = vld [vmem:[#allocation8 + $0x110] sm:$0xff]
    %v257 = vld [vmem:[#allocation8 + $0x118] sm:$0xff]
    %v258 = vld [vmem:[#allocation8 + $0x120] sm:$0xff]
    %v259 = vld [vmem:[#allocation8 + $0x128] sm:$0xff]
    %v260 = vld [vmem:[#allocation8 + $0x130] sm:$0xff]
    %v261 = vld [vmem:[#allocation8 + $0x138] sm:$0xff]
    %v262 = vld [vmem:[#allocation8 + $0x140] sm:$0xff]
    %v263 = vld [vmem:[#allocation8 + $0x148] sm:$0xff]
    %v264 = vld [vmem:[#allocation8 + $0x150] sm:$0xff]
    %v265 = vld [vmem:[#allocation8 + $0x158] sm:$0xff]
    %v266 = vld [vmem:[#allocation8 + $0x160] sm:$0xff]
    %v267 = vld [vmem:[#allocation8 + $0x168] sm:$0xff]
    %v268 = vld [vmem:[#allocation8 + $0x170] sm:$0xff]
    %v269 = vld [vmem:[#allocation8 + $0x178] sm:$0xff]
    %v270 = vld [vmem:[#allocation8 + $0x180] sm:$0xff]
    %v271 = vld [vmem:[#allocation8 + $0x188] sm:$0xff]
    %v272 = vld [vmem:[#allocation8 + $0x190] sm:$0xff]
    %v273 = vld [vmem:[#allocation8 + $0x198] sm:$0xff]
    %v274 = vld [vmem:[#allocation8 + $0x1a0] sm:$0xff]
    %v275 = vld [vmem:[#allocation8 + $0x1a8] sm:$0xff]
    %v276 = vld [vmem:[#allocation8 + $0x1b0] sm:$0xff]
    %v277 = vld [vmem:[#allocation8 + $0x1b8] sm:$0xff]
    %v278 = vld [vmem:[#allocation8 + $0x1c0] sm:$0xff]
    %v279 = vld [vmem:[#allocation8 + $0x1c8] sm:$0xff]
    %v280 = vld [vmem:[#allocation8 + $0x1d0] sm:$0xff]
    %v281 = vld [vmem:[#allocation8 + $0x1d8] sm:$0xff]
    %v282 = vld [vmem:[#allocation8 + $0x1e0] sm:$0xff]
    %v283 = vld [vmem:[#allocation8 + $0x1e8] sm:$0xff]
    %v284 = vld [vmem:[#allocation8 + $0x1f0] sm:$0xff]
    %v285 = vld [vmem:[#allocation8 + $0x1f8] sm:$0xff]
    %v286 = vld [vmem:[#allocation8 + $0x200] sm:$0xff]
    %v287 = vld [vmem:[#allocation8 + $0x208] sm:$0xff]
    %v288 = vld [vmem:[#allocation8 + $0x210] sm:$0xff]
    %v289 = vld [vmem:[#allocation8 + $0x218] sm:$0xff]
    %v290 = vld [vmem:[#allocation8 + $0x220] sm:$0xff]
    %v291 = vld [vmem:[#allocation8 + $0x228] sm:$0xff]
    %v292 = vld [vmem:[#allocation8 + $0x230] sm:$0xff]
    %v293 = vld [vmem:[#allocation8 + $0x238] sm:$0xff]
    %v294 = vld [vmem:[#allocation8 + $0x240] sm:$0xff]
    %v295 = vld [vmem:[#allocation8 + $0x248] sm:$0xff]
    %v296 = vld [vmem:[#allocation8 + $0x250] sm:$0xff]
    %v297 = vld [vmem:[#allocation8 + $0x258] sm:$0xff]
    %v298 = vld [vmem:[#allocation8 + $0x260] sm:$0xff]
    %v299 = vld [vmem:[#allocation8 + $0x268] sm:$0xff]
    %v300 = vld [vmem:[#allocation8 + $0x270] sm:$0xff]
    %v301 = vld [vmem:[#allocation8 + $0x278] sm:$0xff]
    %v302 = vld [vmem:[#allocation8 + $0x280] sm:$0xff]
    %v303 = vld [vmem:[#allocation8 + $0x288] sm:$0xff]
    %v304 = vld [vmem:[#allocation8 + $0x290] sm:$0xff]
    %v305 = vld [vmem:[#allocation8 + $0x298] sm:$0xff]
    %v306 = vld [vmem:[#allocation8 + $0x2a0] sm:$0xff]
    %v307 = vld [vmem:[#allocation8 + $0x2a8] sm:$0xff]
    %v308 = vld [vmem:[#allocation8 + $0x2b0] sm:$0xff]
    %v309 = vld [vmem:[#allocation8 + $0x2b8] sm:$0xff]
    %v310 = vld [vmem:[#allocation8 + $0x2c0] sm:$0xff]
    %v311 = vld [vmem:[#allocation8 + $0x2c8] sm:$0xff]
    %v312 = vld [vmem:[#allocation8 + $0x2d0] sm:$0xff]
    %v313 = vld [vmem:[#allocation8 + $0x2d8] sm:$0xff]
    %v314 = vld [vmem:[#allocation8 + $0x2e0] sm:$0xff]
    %v315 = vld [vmem:[#allocation8 + $0x2e8] sm:$0xff]
    %v316 = vld [vmem:[#allocation8 + $0x2f0] sm:$0xff]
    %v317 = vld [vmem:[#allocation8 + $0x2f8] sm:$0xff]
    %v318 = vld [vmem:[#allocation8 + $0x300] sm:$0xff]
    %v319 = vld [vmem:[#allocation8 + $0x308] sm:$0xff]
    %v320 = vld [vmem:[#allocation8 + $0x310] sm:$0xff]
    %v321 = vld [vmem:[#allocation8 + $0x318] sm:$0xff]
    %v322 = vld [vmem:[#allocation8 + $0x320] sm:$0xff]
    %v323 = vld [vmem:[#allocation8 + $0x328] sm:$0xff]
    %v324 = vld [vmem:[#allocation8 + $0x330] sm:$0xff]
    %v325 = vld [vmem:[#allocation8 + $0x338] sm:$0xff]
    %v326 = vld [vmem:[#allocation8 + $0x340] sm:$0xff]
    %v327 = vld [vmem:[#allocation8 + $0x348] sm:$0xff]
    %v328 = vld [vmem:[#allocation8 + $0x350] sm:$0xff]
    %v329 = vld [vmem:[#allocation8 + $0x358] sm:$0xff]
    %v330 = vld [vmem:[#allocation8 + $0x360] sm:$0xff]
    %v331 = vld [vmem:[#allocation8 + $0x368] sm:$0xff]
    %v332 = vld [vmem:[#allocation8 + $0x370] sm:$0xff]
    %v333 = vld [vmem:[#allocation8 + $0x378] sm:$0xff]
    %v334 = vld [vmem:[#allocation8 + $0x380] sm:$0xff]
    %v335 = vld [vmem:[#allocation8 + $0x388] sm:$0xff]
    %v336 = vld [vmem:[#allocation8 + $0x390] sm:$0xff]
    %v337 = vld [vmem:[#allocation8 + $0x398] sm:$0xff]
    %v338 = vld [vmem:[#allocation8 + $0x3a0] sm:$0xff]
    %v339 = vld [vmem:[#allocation8 + $0x3a8] sm:$0xff]
    %v340 = vld [vmem:[#allocation8 + $0x3b0] sm:$0xff]
    %v341 = vld [vmem:[#allocation8 + $0x3b8] sm:$0xff]
    %v342 = vld [vmem:[#allocation8 + $0x3c0] sm:$0xff]
    %v343 = vld [vmem:[#allocation8 + $0x3c8] sm:$0xff]
    %v344 = vld [vmem:[#allocation8 + $0x3d0] sm:$0xff]
    %v345 = vld [vmem:[#allocation8 + $0x3d8] sm:$0xff]
    %v346 = vld [vmem:[#allocation8 + $0x3e0] sm:$0xff]
    %v347 = vld [vmem:[#allocation8 + $0x3e8] sm:$0xff]
    %v348 = vld [vmem:[#allocation8 + $0x3f0] sm:$0xff]
    %v349 = vld [vmem:[#allocation8 + $0x3f8] sm:$0xff]
    %v350 = vld [vmem:[#allocation8 + $0x400] sm:$0xff]
    %v351 = vld [vmem:[#allocation8 + $0x408] sm:$0xff]
    %v352 = vld [vmem:[#allocation8 + $0x410] sm:$0xff]
    %v353 = vld [vmem:[#allocation8 + $0x418] sm:$0xff]
    %v354 = vld [vmem:[#allocation8 + $0x420] sm:$0xff]
    %v355 = vld [vmem:[#allocation8 + $0x428] sm:$0xff]
    %v356 = vld [vmem:[#allocation8 + $0x430] sm:$0xff]
    %v357 = vld [vmem:[#allocation8 + $0x438] sm:$0xff]
    %v358 = vld [vmem:[#allocation8 + $0x440] sm:$0xff]
    %v359 = vld [vmem:[#allocation8 + $0x448] sm:$0xff]
    %v360 = vld [vmem:[#allocation8 + $0x450] sm:$0xff]
    %v361 = vld [vmem:[#allocation8 + $0x458] sm:$0xff]
    %v362 = vld [vmem:[#allocation8 + $0x460] sm:$0xff]
    %v363 = vld [vmem:[#allocation8 + $0x468] sm:$0xff]
    %v364 = vld [vmem:[#allocation8 + $0x470] sm:$0xff]
    %v365 = vld [vmem:[#allocation8 + $0x478] sm:$0xff]
    %v366 = vld [vmem:[#allocation8 + $0x480] sm:$0xff]
    %v367 = vld [vmem:[#allocation8 + $0x488] sm:$0xff]
    %v368 = vld [vmem:[#allocation8 + $0x490] sm:$0xff]
    %v369 = vld [vmem:[#allocation8 + $0x498] sm:$0xff]
    %v370 = vld [vmem:[#allocation8 + $0x4a0] sm:$0xff]
    %v371 = vld [vmem:[#allocation8 + $0x4a8] sm:$0xff]
    %v372 = vld [vmem:[#allocation8 + $0x4b0] sm:$0xff]
    %v373 = vld [vmem:[#allocation8 + $0x4b8] sm:$0xff]
    %v374 = vld [vmem:[#allocation8 + $0x4c0] sm:$0xff]
    %v375 = vld [vmem:[#allocation8 + $0x4c8] sm:$0xff]
    %v376 = vld [vmem:[#allocation8 + $0x4d0] sm:$0xff]
    %v377 = vld [vmem:[#allocation8 + $0x4d8] sm:$0xff]
    %v378 = vld [vmem:[#allocation8 + $0x4e0] sm:$0xff]
    %v379 = vld [vmem:[#allocation8 + $0x4e8] sm:$0xff]
    %v380 = vld [vmem:[#allocation8 + $0x4f0] sm:$0xff]
    %v381 = vld [vmem:[#allocation8 + $0x4f8] sm:$0xff]
    %v382 = vld [vmem:[#allocation8 + $0x500] sm:$0xff]
    %v383 = vld [vmem:[#allocation8 + $0x508] sm:$0xff]
    %v384 = vld [vmem:[#allocation8 + $0x510] sm:$0xff]
    %v385 = vld [vmem:[#allocation8 + $0x518] sm:$0xff]
    %v386 = vld [vmem:[#allocation8 + $0x520] sm:$0xff]
    %v387 = vld [vmem:[#allocation8 + $0x528] sm:$0xff]
    %v388 = vld [vmem:[#allocation8 + $0x530] sm:$0xff]
    %v389 = vld [vmem:[#allocation8 + $0x538] sm:$0xff]
    %v390 = vld [vmem:[#allocation8 + $0x540] sm:$0xff]
    %v391 = vld [vmem:[#allocation8 + $0x548] sm:$0xff]
    %v392 = vld [vmem:[#allocation8 + $0x550] sm:$0xff]
    %v393 = vld [vmem:[#allocation8 + $0x558] sm:$0xff]
    %v394 = vld [vmem:[#allocation8 + $0x560] sm:$0xff]
    %v395 = vld [vmem:[#allocation8 + $0x568] sm:$0xff]
    %v396 = vld [vmem:[#allocation8 + $0x570] sm:$0xff]
    %v397 = vld [vmem:[#allocation8 + $0x578] sm:$0xff]
    %v398 = vld [vmem:[#allocation8 + $0x580] sm:$0xff]
    %v399 = vld [vmem:[#allocation8 + $0x588] sm:$0xff]
    %v400 = vld [vmem:[#allocation8 + $0x590] sm:$0xff]
    %v401 = vld [vmem:[#allocation8 + $0x598] sm:$0xff]
    %v402 = vld [vmem:[#allocation8 + $0x5a0] sm:$0xff]
    %v403 = vld [vmem:[#allocation8 + $0x5a8] sm:$0xff]
    %v404 = vld [vmem:[#allocation8 + $0x5b0] sm:$0xff]
    %v405 = vld [vmem:[#allocation8 + $0x5b8] sm:$0xff]
    %v406 = vld [vmem:[#allocation8 + $0x5c0] sm:$0xff]
    %v407 = vld [vmem:[#allocation8 + $0x5c8] sm:$0xff]
    %v408 = vld [vmem:[#allocation8 + $0x5d0] sm:$0xff]
    %v409 = vld [vmem:[#allocation8 + $0x5d8] sm:$0xff]
    %v410 = vld [vmem:[#allocation8 + $0x5e0] sm:$0xff]
    %v411 = vld [vmem:[#allocation8 + $0x5e8] sm:$0xff]
    %v412 = vld [vmem:[#allocation8 + $0x5f0] sm:$0xff]
    %v413 = vld [vmem:[#allocation8 + $0x5f8] sm:$0xff]
    %v414 = vld [vmem:[#allocation8 + $0x600] sm:$0xff]
    %v415 = vld [vmem:[#allocation8 + $0x608] sm:$0xff]
    %v416 = vld [vmem:[#allocation8 + $0x610] sm:$0xff]
    %v417 = vld [vmem:[#allocation8 + $0x618] sm:$0xff]
    %v418 = vld [vmem:[#allocation8 + $0x620] sm:$0xff]
    %v419 = vld [vmem:[#allocation8 + $0x628] sm:$0xff]
    %v420 = vld [vmem:[#allocation8 + $0x630] sm:$0xff]
    %v421 = vld [vmem:[#allocation8 + $0x638] sm:$0xff]
    %v422 = vld [vmem:[#allocation8 + $0x640] sm:$0xff]
    %v423 = vld [vmem:[#allocation8 + $0x648] sm:$0xff]
    %v424 = vld [vmem:[#allocation8 + $0x650] sm:$0xff]
    %v425 = vld [vmem:[#allocation8 + $0x658] sm:$0xff]
    %v426 = vld [vmem:[#allocation8 + $0x660] sm:$0xff]
    %v427 = vld [vmem:[#allocation8 + $0x668] sm:$0xff]
    %v428 = vld [vmem:[#allocation8 + $0x670] sm:$0xff]
    %v429 = vld [vmem:[#allocation8 + $0x678] sm:$0xff]
    %v430 = vld [vmem:[#allocation8 + $0x680] sm:$0xff]
    %v431 = vld [vmem:[#allocation8 + $0x688] sm:$0xff]
    %v432 = vld [vmem:[#allocation8 + $0x690] sm:$0xff]
    %v433 = vld [vmem:[#allocation8 + $0x698] sm:$0xff]
    %v434 = vld [vmem:[#allocation8 + $0x6a0] sm:$0xff]
    %v435 = vld [vmem:[#allocation8 + $0x6a8] sm:$0xff]
    %v436 = vld [vmem:[#allocation8 + $0x6b0] sm:$0xff]
    %v437 = vld [vmem:[#allocation8 + $0x6b8] sm:$0xff]
    %v438 = vld [vmem:[#allocation8 + $0x6c0] sm:$0xff]
    %v439 = vld [vmem:[#allocation8 + $0x6c8] sm:$0xff]
    %v440 = vld [vmem:[#allocation8 + $0x6d0] sm:$0xff]
    %v441 = vld [vmem:[#allocation8 + $0x6d8] sm:$0xff]
    %v442 = vld [vmem:[#allocation8 + $0x6e0] sm:$0xff]
    %v443 = vld [vmem:[#allocation8 + $0x6e8] sm:$0xff]
    %v444 = vld [vmem:[#allocation8 + $0x6f0] sm:$0xff]
    %v445 = vld [vmem:[#allocation8 + $0x6f8] sm:$0xff]
    %v446 = vld [vmem:[#allocation8 + $0x700] sm:$0xff]
    %v447 = vld [vmem:[#allocation8 + $0x708] sm:$0xff]
    %v448 = vld [vmem:[#allocation8 + $0x710] sm:$0xff]
    %v449 = vld [vmem:[#allocation8 + $0x718] sm:$0xff]
    %v450 = vld [vmem:[#allocation8 + $0x720] sm:$0xff]
    %v451 = vld [vmem:[#allocation8 + $0x728] sm:$0xff]
    %v452 = vld [vmem:[#allocation8 + $0x730] sm:$0xff]
    %v453 = vld [vmem:[#allocation8 + $0x738] sm:$0xff]
    %v454 = vld [vmem:[#allocation8 + $0x740] sm:$0xff]
    %v455 = vld [vmem:[#allocation8 + $0x748] sm:$0xff]
    %v456 = vld [vmem:[#allocation8 + $0x750] sm:$0xff]
    %v457 = vld [vmem:[#allocation8 + $0x758] sm:$0xff]
    %v458 = vld [vmem:[#allocation8 + $0x760] sm:$0xff]
    %v459 = vld [vmem:[#allocation8 + $0x768] sm:$0xff]
    %v460 = vld [vmem:[#allocation8 + $0x770] sm:$0xff]
    %v461 = vld [vmem:[#allocation8 + $0x778] sm:$0xff]
    %v462 = vld [vmem:[#allocation8 + $0x780] sm:$0xff]
    %v463 = vld [vmem:[#allocation8 + $0x788] sm:$0xff]
    %v464 = vld [vmem:[#allocation8 + $0x790] sm:$0xff]
    %v465 = vld [vmem:[#allocation8 + $0x798] sm:$0xff]
    %v466 = vld [vmem:[#allocation8 + $0x7a0] sm:$0xff]
    %v467 = vld [vmem:[#allocation8 + $0x7a8] sm:$0xff]
    %v468 = vld [vmem:[#allocation8 + $0x7b0] sm:$0xff]
    %v469 = vld [vmem:[#allocation8 + $0x7b8] sm:$0xff]
    %v470 = vld [vmem:[#allocation8 + $0x7c0] sm:$0xff]
    %v471 = vld [vmem:[#allocation8 + $0x7c8] sm:$0xff]
    %v472 = vld [vmem:[#allocation8 + $0x7d0] sm:$0xff]
    %v473 = vld [vmem:[#allocation8 + $0x7d8] sm:$0xff]
    %v474 = vld [vmem:[#allocation8 + $0x7e0] sm:$0xff]
    %v475 = vld [vmem:[#allocation8 + $0x7e8] sm:$0xff]
    %v476 = vld [vmem:[#allocation8 + $0x7f0] sm:$0xff]
    %v477 = vld [vmem:[#allocation8 + $0x7f8] sm:$0xff]
    %v478 = vld [vmem:[#allocation8 + $0x800] sm:$0xff]
    %v479 = vld [vmem:[#allocation8 + $0x808] sm:$0xff]
    %v480 = vld [vmem:[#allocation8 + $0x810] sm:$0xff]
    %v481 = vld [vmem:[#allocation8 + $0x818] sm:$0xff]
    %v482 = vld [vmem:[#allocation8 + $0x820] sm:$0xff]
    %v483 = vld [vmem:[#allocation8 + $0x828] sm:$0xff]
    %v484 = vld [vmem:[#allocation8 + $0x830] sm:$0xff]
    %v485 = vld [vmem:[#allocation8 + $0x838] sm:$0xff]
    %v486 = vld [vmem:[#allocation8 + $0x840] sm:$0xff]
    %v487 = vld [vmem:[#allocation8 + $0x848] sm:$0xff]
    %v488 = vld [vmem:[#allocation8 + $0x850] sm:$0xff]
    %v489 = vld [vmem:[#allocation8 + $0x858] sm:$0xff]
    %v490 = vld [vmem:[#allocation8 + $0x860] sm:$0xff]
    %v491 = vld [vmem:[#allocation8 + $0x868] sm:$0xff]
    %v492 = vld [vmem:[#allocation8 + $0x870] sm:$0xff]
    %v493 = vld [vmem:[#allocation8 + $0x878] sm:$0xff]
    %v494 = vld [vmem:[#allocation8 + $0x880] sm:$0xff]
    %v495 = vld [vmem:[#allocation8 + $0x888] sm:$0xff]
    %v496 = vld [vmem:[#allocation8 + $0x890] sm:$0xff]
    %v497 = vld [vmem:[#allocation8 + $0x898] sm:$0xff]
    %v498 = vld [vmem:[#allocation8 + $0x8a0] sm:$0xff]
    %v499 = vld [vmem:[#allocation8 + $0x8a8] sm:$0xff]
    %v500 = vld [vmem:[#allocation8 + $0x8b0] sm:$0xff]
    %v501 = vld [vmem:[#allocation8 + $0x8b8] sm:$0xff]
    %v502 = vld [vmem:[#allocation8 + $0x8c0] sm:$0xff]
    %v503 = vld [vmem:[#allocation8 + $0x8c8] sm:$0xff]
    %v504 = vld [vmem:[#allocation8 + $0x8d0] sm:$0xff]
    %v505 = vld [vmem:[#allocation8 + $0x8d8] sm:$0xff]
    %v506 = vld [vmem:[#allocation8 + $0x8e0] sm:$0xff]
    %v507 = vld [vmem:[#allocation8 + $0x8e8] sm:$0xff]
    %v508 = vld [vmem:[#allocation8 + $0x8f0] sm:$0xff]
    %v509 = vld [vmem:[#allocation8 + $0x8f8] sm:$0xff]
    %v510 = vld [vmem:[#allocation8 + $0x900] sm:$0xff]
    %v511 = vld [vmem:[#allocation8 + $0x908] sm:$0xff]
    %v512 = vld [vmem:[#allocation8 + $0x910] sm:$0xff]
    %v513 = vld [vmem:[#allocation8 + $0x918] sm:$0xff]
    %v514 = vld [vmem:[#allocation8 + $0x920] sm:$0xff]
    %v515 = vld [vmem:[#allocation8 + $0x928] sm:$0xff]
    %v516 = vld [vmem:[#allocation8 + $0x930] sm:$0xff]
    %v517 = vld [vmem:[#allocation8 + $0x938] sm:$0xff]
    %v518 = vld [vmem:[#allocation8 + $0x940] sm:$0xff]
    %v519 = vld [vmem:[#allocation8 + $0x948] sm:$0xff]
    %v520 = vld [vmem:[#allocation8 + $0x950] sm:$0xff]
    %v521 = vld [vmem:[#allocation8 + $0x958] sm:$0xff]
    %v522 = vld [vmem:[#allocation8 + $0x960] sm:$0xff]
    %v523 = vld [vmem:[#allocation8 + $0x968] sm:$0xff]
    %v524 = vld [vmem:[#allocation8 + $0x970] sm:$0xff]
    %v525 = vld [vmem:[#allocation8 + $0x978] sm:$0xff]
    %v526 = vld [vmem:[#allocation8 + $0x980] sm:$0xff]
    %v527 = vld [vmem:[#allocation8 + $0x988] sm:$0xff]
    %v528 = vld [vmem:[#allocation8 + $0x990] sm:$0xff]
    %v529 = vld [vmem:[#allocation8 + $0x998] sm:$0xff]
    %v530 = vld [vmem:[#allocation8 + $0x9a0] sm:$0xff]
    %v531 = vld [vmem:[#allocation8 + $0x9a8] sm:$0xff]
    %v532 = vld [vmem:[#allocation8 + $0x9b0] sm:$0xff]
    %v533 = vld [vmem:[#allocation8 + $0x9b8] sm:$0xff]
    %v534 = vld [vmem:[#allocation8 + $0x9c0] sm:$0xff]
    %v535 = vld [vmem:[#allocation8 + $0x9c8] sm:$0xff]
    %v536 = vld [vmem:[#allocation8 + $0x9d0] sm:$0xff]
    %v537 = vld [vmem:[#allocation8 + $0x9d8] sm:$0xff]
    %v538 = vld [vmem:[#allocation8 + $0x9e0] sm:$0xff]
    %v539 = vld [vmem:[#allocation8 + $0x9e8] sm:$0xff]
    %v540 = vld [vmem:[#allocation8 + $0x9f0] sm:$0xff]
    %v541 = vld [vmem:[#allocation8 + $0x9f8] sm:$0xff]
    %v542 = vld [vmem:[#allocation8 + $0xa00] sm:$0xff]
    %v543 = vld [vmem:[#allocation8 + $0xa08] sm:$0xff]
    %v544 = vld [vmem:[#allocation8 + $0xa10] sm:$0xff]
    %v545 = vld [vmem:[#allocation8 + $0xa18] sm:$0xff]
    %v546 = vld [vmem:[#allocation8 + $0xa20] sm:$0xff]
    %v547 = vld [vmem:[#allocation8 + $0xa28] sm:$0xff]
    %v548 = vld [vmem:[#allocation8 + $0xa30] sm:$0xff]
    %v549 = vld [vmem:[#allocation8 + $0xa38] sm:$0xff]
    %v550 = vld [vmem:[#allocation8 + $0xa40] sm:$0xff]
    %v551 = vld [vmem:[#allocation8 + $0xa48] sm:$0xff]
    %v552 = vld [vmem:[#allocation8 + $0xa50] sm:$0xff]
    %v553 = vld [vmem:[#allocation8 + $0xa58] sm:$0xff]
    %v554 = vld [vmem:[#allocation8 + $0xa60] sm:$0xff]
    %v555 = vld [vmem:[#allocation8 + $0xa68] sm:$0xff]
    %v556 = vld [vmem:[#allocation8 + $0xa70] sm:$0xff]
    %v557 = vld [vmem:[#allocation8 + $0xa78] sm:$0xff]
    %v558 = vld [vmem:[#allocation8 + $0xa80] sm:$0xff]
    %v559 = vld [vmem:[#allocation8 + $0xa88] sm:$0xff]
    %v560 = vld [vmem:[#allocation8 + $0xa90] sm:$0xff]
    %v561 = vld [vmem:[#allocation8 + $0xa98] sm:$0xff]
    %v562 = vld [vmem:[#allocation8 + $0xaa0] sm:$0xff]
    %v563 = vld [vmem:[#allocation8 + $0xaa8] sm:$0xff]
    %v564 = vld [vmem:[#allocation8 + $0xab0] sm:$0xff]
    %v565 = vld [vmem:[#allocation8 + $0xab8] sm:$0xff]
    %v566 = vld [vmem:[#allocation8 + $0xac0] sm:$0xff]
    %v567 = vld [vmem:[#allocation8 + $0xac8] sm:$0xff]
    %v568 = vld [vmem:[#allocation8 + $0xad0] sm:$0xff]
    %v569 = vld [vmem:[#allocation8 + $0xad8] sm:$0xff]
    %v570 = vld [vmem:[#allocation8 + $0xae0] sm:$0xff]
    %v571 = vld [vmem:[#allocation8 + $0xae8] sm:$0xff]
    %v572 = vld [vmem:[#allocation8 + $0xaf0] sm:$0xff]
    %v573 = vld [vmem:[#allocation8 + $0xaf8] sm:$0xff]
    %v574 = vld [vmem:[#allocation8 + $0xb00] sm:$0xff]
    %v575 = vld [vmem:[#allocation8 + $0xb08] sm:$0xff]
    %v576 = vld [vmem:[#allocation8 + $0xb10] sm:$0xff]
    %v577 = vld [vmem:[#allocation8 + $0xb18] sm:$0xff]
    %v578 = vld [vmem:[#allocation8 + $0xb20] sm:$0xff]
    %v579 = vld [vmem:[#allocation8 + $0xb28] sm:$0xff]
    %v580 = vld [vmem:[#allocation8 + $0xb30] sm:$0xff]
    %v581 = vld [vmem:[#allocation8 + $0xb38] sm:$0xff]
    %v582 = vld [vmem:[#allocation8 + $0xb40] sm:$0xff]
    %v583 = vld [vmem:[#allocation8 + $0xb48] sm:$0xff]
    %v584 = vld [vmem:[#allocation8 + $0xb50] sm:$0xff]
    %v585 = vld [vmem:[#allocation8 + $0xb58] sm:$0xff]
    %v586 = vld [vmem:[#allocation8 + $0xb60] sm:$0xff]
    %v587 = vld [vmem:[#allocation8 + $0xb68] sm:$0xff]
    %v588 = vld [vmem:[#allocation8 + $0xb70] sm:$0xff]
    %v589 = vld [vmem:[#allocation8 + $0xb78] sm:$0xff]
    %v590 = vld [vmem:[#allocation8 + $0xb80] sm:$0xff]
    %v591 = vld [vmem:[#allocation8 + $0xb88] sm:$0xff]
    %v592 = vld [vmem:[#allocation8 + $0xb90] sm:$0xff]
    %v593 = vld [vmem:[#allocation8 + $0xb98] sm:$0xff]
    %v594 = vld [vmem:[#allocation8 + $0xba0] sm:$0xff]
    %v595 = vld [vmem:[#allocation8 + $0xba8] sm:$0xff]
    %v596 = vld [vmem:[#allocation8 + $0xbb0] sm:$0xff]
    %v597 = vld [vmem:[#allocation8 + $0xbb8] sm:$0xff]
    %v598 = vld [vmem:[#allocation8 + $0xbc0] sm:$0xff]
    %v599 = vld [vmem:[#allocation8 + $0xbc8] sm:$0xff]
    %v600 = vld [vmem:[#allocation8 + $0xbd0] sm:$0xff]
    %v601 = vld [vmem:[#allocation8 + $0xbd8] sm:$0xff]
    %v602 = vld [vmem:[#allocation8 + $0xbe0] sm:$0xff]
    %v603 = vld [vmem:[#allocation8 + $0xbe8] sm:$0xff]
    %v604 = vld [vmem:[#allocation8 + $0xbf0] sm:$0xff]
    %v605 = vld [vmem:[#allocation8 + $0xbf8] sm:$0xff]
    %v606 = vld [vmem:[#allocation8 + $0xc00] sm:$0xff]
    %v607 = vld [vmem:[#allocation8 + $0xc08] sm:$0xff]
    %v608 = vld [vmem:[#allocation8 + $0xc10] sm:$0xff]
    %v609 = vld [vmem:[#allocation8 + $0xc18] sm:$0xff]
    %v610 = vld [vmem:[#allocation8 + $0xc20] sm:$0xff]
    %v611 = vld [vmem:[#allocation8 + $0xc28] sm:$0xff]
    %v612 = vld [vmem:[#allocation8 + $0xc30] sm:$0xff]
    %v613 = vld [vmem:[#allocation8 + $0xc38] sm:$0xff]
    %v614 = vld [vmem:[#allocation8 + $0xc40] sm:$0xff]
    %v615 = vld [vmem:[#allocation8 + $0xc48] sm:$0xff]
    %v616 = vld [vmem:[#allocation8 + $0xc50] sm:$0xff]
    %v617 = vld [vmem:[#allocation8 + $0xc58] sm:$0xff]
    %v618 = vld [vmem:[#allocation8 + $0xc60] sm:$0xff]
    %v619 = vld [vmem:[#allocation8 + $0xc68] sm:$0xff]
    %v620 = vld [vmem:[#allocation8 + $0xc70] sm:$0xff]
    %v621 = vld [vmem:[#allocation8 + $0xc78] sm:$0xff]
    %v622 = vld [vmem:[#allocation10] sm:$0xff]
    %v623 = vld [vmem:[#allocation10 + $0x8] sm:$0xff]
    %v624 = vld [vmem:[#allocation10 + $0x10] sm:$0xff]
    %v625 = vld [vmem:[#allocation10 + $0x18] sm:$0x1]
    %v630 = vperm.slane %v622, 0
    %v631 = vperm.slane %v622, 1
    %v632 = vperm.slane %v622, 2
    %v633 = vperm.slane %v622, 3
    %v634 = vperm.slane %v622, 4
    %v635 = vperm.slane %v622, 5
    %v636 = vperm.slane %v622, 6
    %v637 = vperm.slane %v622, 7
    %v638 = vperm.slane %v623, 0
    %v639 = vperm.slane %v623, 1
    %v640 = vperm.slane %v623, 2
    %v641 = vperm.slane %v623, 3
    %v642 = vperm.slane %v623, 4
    %v643 = vperm.slane %v623, 5
    %v644 = vperm.slane %v623, 6
    %v645 = vperm.slane %v623, 7
    %v646 = vperm.slane %v624, 0
    %v647 = vperm.slane %v624, 1
    %v648 = vperm.slane %v624, 2
    %v649 = vperm.slane %v624, 3
    %v650 = vperm.slane %v624, 4
    %v651 = vperm.slane %v624, 5
    %v652 = vperm.slane %v624, 6
    %v653 = vperm.slane %v624, 7
    %v654 = vperm.slane %v625, 0
    %680 = vmatpush.msra.mxu0 %v597
    %681 = vmatpush.msra.mxu0 %v572
    %682 = vmatpush.msra.mxu0 %v547
    %683 = vmatpush.msra.mxu0 %v522
    %684 = vmatpush.msra.mxu0 %v497
    %685 = vmatpush.msra.mxu0 %v472
    %686 = vmatpush.msra.mxu0 %v447
    %687 = vmatpush.msra.mxu0 %v422
    %688 = vmatpush.msra.mxu0 %v397
    %689 = vmatpush.msra.mxu0 %v372
    %690 = vmatpush.msra.mxu0 %v347
    %691 = vmatpush.msra.mxu0 %v322
    %692 = vmatpush.msra.mxu0 %v297
    %693 = vmatpush.msra.mxu0 %v272
    %694 = vmatpush.msra.mxu0 %v247
    %695 = vmatpush.msra.mxu0 %v222
    %696 = vmatmul.f32.gmra.mxu0 %v221
    %v697 = vpop.f32.mrf.mxu0
    %v698 = vadd.f32 %v630, %v697
    %699 = vdwg.mxu0
    %700 = vmatpush.msra.mxu0 %v598
    %701 = vmatpush.msra.mxu0 %v573
    %702 = vmatpush.msra.mxu0 %v548
    %703 = vmatpush.msra.mxu0 %v523
    %704 = vmatpush.msra.mxu0 %v498
    %705 = vmatpush.msra.mxu0 %v473
    %706 = vmatpush.msra.mxu0 %v448
    %707 = vmatpush.msra.mxu0 %v423
    %708 = vmatpush.msra.mxu0 %v398
    %709 = vmatpush.msra.mxu0 %v373
    %710 = vmatpush.msra.mxu0 %v348
    %711 = vmatpush.msra.mxu0 %v323
    %712 = vmatpush.msra.mxu0 %v298
    %713 = vmatpush.msra.mxu0 %v273
    %714 = vmatpush.msra.mxu0 %v248
    %715 = vmatpush.msra.mxu0 %v223
    %716 = vmatmul.f32.gmra.mxu0 %v221
    %v717 = vpop.f32.mrf.mxu0
    %v718 = vadd.f32 %v631, %v717
    %719 = vdwg.mxu0
    %720 = vmatpush.msra.mxu0 %v599
    %721 = vmatpush.msra.mxu0 %v574
    %722 = vmatpush.msra.mxu0 %v549
    %723 = vmatpush.msra.mxu0 %v524
    %724 = vmatpush.msra.mxu0 %v499
    %725 = vmatpush.msra.mxu0 %v474
    %726 = vmatpush.msra.mxu0 %v449
    %727 = vmatpush.msra.mxu0 %v424
    %728 = vmatpush.msra.mxu0 %v399
    %729 = vmatpush.msra.mxu0 %v374
    %730 = vmatpush.msra.mxu0 %v349
    %731 = vmatpush.msra.mxu0 %v324
    %732 = vmatpush.msra.mxu0 %v299
    %733 = vmatpush.msra.mxu0 %v274
    %734 = vmatpush.msra.mxu0 %v249
    %735 = vmatpush.msra.mxu0 %v224
    %736 = vmatmul.f32.gmra.mxu0 %v221
    %v737 = vpop.f32.mrf.mxu0
    %v738 = vadd.f32 %v632, %v737
    %739 = vdwg.mxu0
    %740 = vmatpush.msra.mxu0 %v600
    %741 = vmatpush.msra.mxu0 %v575
    %742 = vmatpush.msra.mxu0 %v550
    %743 = vmatpush.msra.mxu0 %v525
    %744 = vmatpush.msra.mxu0 %v500
    %745 = vmatpush.msra.mxu0 %v475
    %746 = vmatpush.msra.mxu0 %v450
    %747 = vmatpush.msra.mxu0 %v425
    %748 = vmatpush.msra.mxu0 %v400
    %749 = vmatpush.msra.mxu0 %v375
    %750 = vmatpush.msra.mxu0 %v350
    %751 = vmatpush.msra.mxu0 %v325
    %752 = vmatpush.msra.mxu0 %v300
    %753 = vmatpush.msra.mxu0 %v275
    %754 = vmatpush.msra.mxu0 %v250
    %755 = vmatpush.msra.mxu0 %v225
    %756 = vmatmul.f32.gmra.mxu0 %v221
    %v757 = vpop.f32.mrf.mxu0
    %v758 = vadd.f32 %v633, %v757
    %759 = vdwg.mxu0
    %760 = vmatpush.msra.mxu0 %v601
    %761 = vmatpush.msra.mxu0 %v576
    %762 = vmatpush.msra.mxu0 %v551
    %763 = vmatpush.msra.mxu0 %v526
    %764 = vmatpush.msra.mxu0 %v501
    %765 = vmatpush.msra.mxu0 %v476
    %766 = vmatpush.msra.mxu0 %v451
    %767 = vmatpush.msra.mxu0 %v426
    %768 = vmatpush.msra.mxu0 %v401
    %769 = vmatpush.msra.mxu0 %v376
    %770 = vmatpush.msra.mxu0 %v351
    %771 = vmatpush.msra.mxu0 %v326
    %772 = vmatpush.msra.mxu0 %v301
    %773 = vmatpush.msra.mxu0 %v276
    %774 = vmatpush.msra.mxu0 %v251
    %775 = vmatpush.msra.mxu0 %v226
    %776 = vmatmul.f32.gmra.mxu0 %v221
    %v777 = vpop.f32.mrf.mxu0
    %v778 = vadd.f32 %v634, %v777
    %779 = vdwg.mxu0
    %780 = vmatpush.msra.mxu0 %v602
    %781 = vmatpush.msra.mxu0 %v577
    %782 = vmatpush.msra.mxu0 %v552
    %783 = vmatpush.msra.mxu0 %v527
    %784 = vmatpush.msra.mxu0 %v502
    %785 = vmatpush.msra.mxu0 %v477
    %786 = vmatpush.msra.mxu0 %v452
    %787 = vmatpush.msra.mxu0 %v427
    %788 = vmatpush.msra.mxu0 %v402
    %789 = vmatpush.msra.mxu0 %v377
    %790 = vmatpush.msra.mxu0 %v352
    %791 = vmatpush.msra.mxu0 %v327
    %792 = vmatpush.msra.mxu0 %v302
    %793 = vmatpush.msra.mxu0 %v277
    %794 = vmatpush.msra.mxu0 %v252
    %795 = vmatpush.msra.mxu0 %v227
    %796 = vmatmul.f32.gmra.mxu0 %v221
    %v797 = vpop.f32.mrf.mxu0
    %v798 = vadd.f32 %v635, %v797
    %799 = vdwg.mxu0
    %800 = vmatpush.msra.mxu0 %v603
    %801 = vmatpush.msra.mxu0 %v578
    %802 = vmatpush.msra.mxu0 %v553
    %803 = vmatpush.msra.mxu0 %v528
    %804 = vmatpush.msra.mxu0 %v503
    %805 = vmatpush.msra.mxu0 %v478
    %806 = vmatpush.msra.mxu0 %v453
    %807 = vmatpush.msra.mxu0 %v428
    %808 = vmatpush.msra.mxu0 %v403
    %809 = vmatpush.msra.mxu0 %v378
    %810 = vmatpush.msra.mxu0 %v353
    %811 = vmatpush.msra.mxu0 %v328
    %812 = vmatpush.msra.mxu0 %v303
    %813 = vmatpush.msra.mxu0 %v278
    %814 = vmatpush.msra.mxu0 %v253
    %815 = vmatpush.msra.mxu0 %v228
    %816 = vmatmul.f32.gmra.mxu0 %v221
    %v817 = vpop.f32.mrf.mxu0
    %v818 = vadd.f32 %v636, %v817
    %819 = vdwg.mxu0
    %820 = vmatpush.msra.mxu0 %v604
    %821 = vmatpush.msra.mxu0 %v579
    %822 = vmatpush.msra.mxu0 %v554
    %823 = vmatpush.msra.mxu0 %v529
    %824 = vmatpush.msra.mxu0 %v504
    %825 = vmatpush.msra.mxu0 %v479
    %826 = vmatpush.msra.mxu0 %v454
    %827 = vmatpush.msra.mxu0 %v429
    %828 = vmatpush.msra.mxu0 %v404
    %829 = vmatpush.msra.mxu0 %v379
    %830 = vmatpush.msra.mxu0 %v354
    %831 = vmatpush.msra.mxu0 %v329
    %832 = vmatpush.msra.mxu0 %v304
    %833 = vmatpush.msra.mxu0 %v279
    %834 = vmatpush.msra.mxu0 %v254
    %835 = vmatpush.msra.mxu0 %v229
    %836 = vmatmul.f32.gmra.mxu0 %v221
    %v837 = vpop.f32.mrf.mxu0
    %v838 = vadd.f32 %v637, %v837
    %839 = vdwg.mxu0
    %840 = vmatpush.msra.mxu0 %v605
    %841 = vmatpush.msra.mxu0 %v580
    %842 = vmatpush.msra.mxu0 %v555
    %843 = vmatpush.msra.mxu0 %v530
    %844 = vmatpush.msra.mxu0 %v505
    %845 = vmatpush.msra.mxu0 %v480
    %846 = vmatpush.msra.mxu0 %v455
    %847 = vmatpush.msra.mxu0 %v430
    %848 = vmatpush.msra.mxu0 %v405
    %849 = vmatpush.msra.mxu0 %v380
    %850 = vmatpush.msra.mxu0 %v355
    %851 = vmatpush.msra.mxu0 %v330
    %852 = vmatpush.msra.mxu0 %v305
    %853 = vmatpush.msra.mxu0 %v280
    %854 = vmatpush.msra.mxu0 %v255
    %855 = vmatpush.msra.mxu0 %v230
    %856 = vmatmul.f32.gmra.mxu0 %v221
    %v857 = vpop.f32.mrf.mxu0
    %v858 = vadd.f32 %v638, %v857
    %859 = vdwg.mxu0
    %860 = vmatpush.msra.mxu0 %v606
    %861 = vmatpush.msra.mxu0 %v581
    %862 = vmatpush.msra.mxu0 %v556
    %863 = vmatpush.msra.mxu0 %v531
    %864 = vmatpush.msra.mxu0 %v506
    %865 = vmatpush.msra.mxu0 %v481
    %866 = vmatpush.msra.mxu0 %v456
    %867 = vmatpush.msra.mxu0 %v431
    %868 = vmatpush.msra.mxu0 %v406
    %869 = vmatpush.msra.mxu0 %v381
    %870 = vmatpush.msra.mxu0 %v356
    %871 = vmatpush.msra.mxu0 %v331
    %872 = vmatpush.msra.mxu0 %v306
    %873 = vmatpush.msra.mxu0 %v281
    %874 = vmatpush.msra.mxu0 %v256
    %875 = vmatpush.msra.mxu0 %v231
    %876 = vmatmul.f32.gmra.mxu0 %v221
    %v877 = vpop.f32.mrf.mxu0
    %v878 = vadd.f32 %v639, %v877
    %879 = vdwg.mxu0
    %880 = vmatpush.msra.mxu0 %v607
    %881 = vmatpush.msra.mxu0 %v582
    %882 = vmatpush.msra.mxu0 %v557
    %883 = vmatpush.msra.mxu0 %v532
    %884 = vmatpush.msra.mxu0 %v507
    %885 = vmatpush.msra.mxu0 %v482
    %886 = vmatpush.msra.mxu0 %v457
    %887 = vmatpush.msra.mxu0 %v432
    %888 = vmatpush.msra.mxu0 %v407
    %889 = vmatpush.msra.mxu0 %v382
    %890 = vmatpush.msra.mxu0 %v357
    %891 = vmatpush.msra.mxu0 %v332
    %892 = vmatpush.msra.mxu0 %v307
    %893 = vmatpush.msra.mxu0 %v282
    %894 = vmatpush.msra.mxu0 %v257
    %895 = vmatpush.msra.mxu0 %v232
    %896 = vmatmul.f32.gmra.mxu0 %v221
    %v897 = vpop.f32.mrf.mxu0
    %v898 = vadd.f32 %v640, %v897
    %899 = vdwg.mxu0
    %900 = vmatpush.msra.mxu0 %v608
    %901 = vmatpush.msra.mxu0 %v583
    %902 = vmatpush.msra.mxu0 %v558
    %903 = vmatpush.msra.mxu0 %v533
    %904 = vmatpush.msra.mxu0 %v508
    %905 = vmatpush.msra.mxu0 %v483
    %906 = vmatpush.msra.mxu0 %v458
    %907 = vmatpush.msra.mxu0 %v433
    %908 = vmatpush.msra.mxu0 %v408
    %909 = vmatpush.msra.mxu0 %v383
    %910 = vmatpush.msra.mxu0 %v358
    %911 = vmatpush.msra.mxu0 %v333
    %912 = vmatpush.msra.mxu0 %v308
    %913 = vmatpush.msra.mxu0 %v283
    %914 = vmatpush.msra.mxu0 %v258
    %915 = vmatpush.msra.mxu0 %v233
    %916 = vmatmul.f32.gmra.mxu0 %v221
    %v917 = vpop.f32.mrf.mxu0
    %v918 = vadd.f32 %v641, %v917
    %919 = vdwg.mxu0
    %920 = vmatpush.msra.mxu0 %v609
    %921 = vmatpush.msra.mxu0 %v584
    %922 = vmatpush.msra.mxu0 %v559
    %923 = vmatpush.msra.mxu0 %v534
    %924 = vmatpush.msra.mxu0 %v509
    %925 = vmatpush.msra.mxu0 %v484
    %926 = vmatpush.msra.mxu0 %v459
    %927 = vmatpush.msra.mxu0 %v434
    %928 = vmatpush.msra.mxu0 %v409
    %929 = vmatpush.msra.mxu0 %v384
    %930 = vmatpush.msra.mxu0 %v359
    %931 = vmatpush.msra.mxu0 %v334
    %932 = vmatpush.msra.mxu0 %v309
    %933 = vmatpush.msra.mxu0 %v284
    %934 = vmatpush.msra.mxu0 %v259
    %935 = vmatpush.msra.mxu0 %v234
    %936 = vmatmul.f32.gmra.mxu0 %v221
    %v937 = vpop.f32.mrf.mxu0
    %v938 = vadd.f32 %v642, %v937
    %939 = vdwg.mxu0
    %940 = vmatpush.msra.mxu0 %v610
    %941 = vmatpush.msra.mxu0 %v585
    %942 = vmatpush.msra.mxu0 %v560
    %943 = vmatpush.msra.mxu0 %v535
    %944 = vmatpush.msra.mxu0 %v510
    %945 = vmatpush.msra.mxu0 %v485
    %946 = vmatpush.msra.mxu0 %v460
    %947 = vmatpush.msra.mxu0 %v435
    %948 = vmatpush.msra.mxu0 %v410
    %949 = vmatpush.msra.mxu0 %v385
    %950 = vmatpush.msra.mxu0 %v360
    %951 = vmatpush.msra.mxu0 %v335
    %952 = vmatpush.msra.mxu0 %v310
    %953 = vmatpush.msra.mxu0 %v285
    %954 = vmatpush.msra.mxu0 %v260
    %955 = vmatpush.msra.mxu0 %v235
    %956 = vmatmul.f32.gmra.mxu0 %v221
    %v957 = vpop.f32.mrf.mxu0
    %v958 = vadd.f32 %v643, %v957
    %959 = vdwg.mxu0
    %960 = vmatpush.msra.mxu0 %v611
    %961 = vmatpush.msra.mxu0 %v586
    %962 = vmatpush.msra.mxu0 %v561
    %963 = vmatpush.msra.mxu0 %v536
    %964 = vmatpush.msra.mxu0 %v511
    %965 = vmatpush.msra.mxu0 %v486
    %966 = vmatpush.msra.mxu0 %v461
    %967 = vmatpush.msra.mxu0 %v436
    %968 = vmatpush.msra.mxu0 %v411
    %969 = vmatpush.msra.mxu0 %v386
    %970 = vmatpush.msra.mxu0 %v361
    %971 = vmatpush.msra.mxu0 %v336
    %972 = vmatpush.msra.mxu0 %v311
    %973 = vmatpush.msra.mxu0 %v286
    %974 = vmatpush.msra.mxu0 %v261
    %975 = vmatpush.msra.mxu0 %v236
    %976 = vmatmul.f32.gmra.mxu0 %v221
    %v977 = vpop.f32.mrf.mxu0
    %v978 = vadd.f32 %v644, %v977
    %979 = vdwg.mxu0
    %980 = vmatpush.msra.mxu0 %v612
    %981 = vmatpush.msra.mxu0 %v587
    %982 = vmatpush.msra.mxu0 %v562
    %983 = vmatpush.msra.mxu0 %v537
    %984 = vmatpush.msra.mxu0 %v512
    %985 = vmatpush.msra.mxu0 %v487
    %986 = vmatpush.msra.mxu0 %v462
    %987 = vmatpush.msra.mxu0 %v437
    %988 = vmatpush.msra.mxu0 %v412
    %989 = vmatpush.msra.mxu0 %v387
    %990 = vmatpush.msra.mxu0 %v362
    %991 = vmatpush.msra.mxu0 %v337
    %992 = vmatpush.msra.mxu0 %v312
    %993 = vmatpush.msra.mxu0 %v287
    %994 = vmatpush.msra.mxu0 %v262
    %995 = vmatpush.msra.mxu0 %v237
    %996 = vmatmul.f32.gmra.mxu0 %v221
    %v997 = vpop.f32.mrf.mxu0
    %v998 = vadd.f32 %v645, %v997
    %999 = vdwg.mxu0
    %1000 = vmatpush.msra.mxu0 %v613
    %1001 = vmatpush.msra.mxu0 %v588
    %1002 = vmatpush.msra.mxu0 %v563
    %1003 = vmatpush.msra.mxu0 %v538
    %1004 = vmatpush.msra.mxu0 %v513
    %1005 = vmatpush.msra.mxu0 %v488
    %1006 = vmatpush.msra.mxu0 %v463
    %1007 = vmatpush.msra.mxu0 %v438
    %1008 = vmatpush.msra.mxu0 %v413
    %1009 = vmatpush.msra.mxu0 %v388
    %1010 = vmatpush.msra.mxu0 %v363
    %1011 = vmatpush.msra.mxu0 %v338
    %1012 = vmatpush.msra.mxu0 %v313
    %1013 = vmatpush.msra.mxu0 %v288
    %1014 = vmatpush.msra.mxu0 %v263
    %1015 = vmatpush.msra.mxu0 %v238
    %1016 = vmatmul.f32.gmra.mxu0 %v221
    %v1017 = vpop.f32.mrf.mxu0
    %v1018 = vadd.f32 %v646, %v1017
    %1019 = vdwg.mxu0
    %1020 = vmatpush.msra.mxu0 %v614
    %1021 = vmatpush.msra.mxu0 %v589
    %1022 = vmatpush.msra.mxu0 %v564
    %1023 = vmatpush.msra.mxu0 %v539
    %1024 = vmatpush.msra.mxu0 %v514
    %1025 = vmatpush.msra.mxu0 %v489
    %1026 = vmatpush.msra.mxu0 %v464
    %1027 = vmatpush.msra.mxu0 %v439
    %1028 = vmatpush.msra.mxu0 %v414
    %1029 = vmatpush.msra.mxu0 %v389
    %1030 = vmatpush.msra.mxu0 %v364
    %1031 = vmatpush.msra.mxu0 %v339
    %1032 = vmatpush.msra.mxu0 %v314
    %1033 = vmatpush.msra.mxu0 %v289
    %1034 = vmatpush.msra.mxu0 %v264
    %1035 = vmatpush.msra.mxu0 %v239
    %1036 = vmatmul.f32.gmra.mxu0 %v221
    %v1037 = vpop.f32.mrf.mxu0
    %v1038 = vadd.f32 %v647, %v1037
    %1039 = vdwg.mxu0
    %1040 = vmatpush.msra.mxu0 %v615
    %1041 = vmatpush.msra.mxu0 %v590
    %1042 = vmatpush.msra.mxu0 %v565
    %1043 = vmatpush.msra.mxu0 %v540
    %1044 = vmatpush.msra.mxu0 %v515
    %1045 = vmatpush.msra.mxu0 %v490
    %1046 = vmatpush.msra.mxu0 %v465
    %1047 = vmatpush.msra.mxu0 %v440
    %1048 = vmatpush.msra.mxu0 %v415
    %1049 = vmatpush.msra.mxu0 %v390
    %1050 = vmatpush.msra.mxu0 %v365
    %1051 = vmatpush.msra.mxu0 %v340
    %1052 = vmatpush.msra.mxu0 %v315
    %1053 = vmatpush.msra.mxu0 %v290
    %1054 = vmatpush.msra.mxu0 %v265
    %1055 = vmatpush.msra.mxu0 %v240
    %1056 = vmatmul.f32.gmra.mxu0 %v221
    %v1057 = vpop.f32.mrf.mxu0
    %v1058 = vadd.f32 %v648, %v1057
    %1059 = vdwg.mxu0
    %1060 = vmatpush.msra.mxu0 %v616
    %1061 = vmatpush.msra.mxu0 %v591
    %1062 = vmatpush.msra.mxu0 %v566
    %1063 = vmatpush.msra.mxu0 %v541
    %1064 = vmatpush.msra.mxu0 %v516
    %1065 = vmatpush.msra.mxu0 %v491
    %1066 = vmatpush.msra.mxu0 %v466
    %1067 = vmatpush.msra.mxu0 %v441
    %1068 = vmatpush.msra.mxu0 %v416
    %1069 = vmatpush.msra.mxu0 %v391
    %1070 = vmatpush.msra.mxu0 %v366
    %1071 = vmatpush.msra.mxu0 %v341
    %1072 = vmatpush.msra.mxu0 %v316
    %1073 = vmatpush.msra.mxu0 %v291
    %1074 = vmatpush.msra.mxu0 %v266
    %1075 = vmatpush.msra.mxu0 %v241
    %1076 = vmatmul.f32.gmra.mxu0 %v221
    %v1077 = vpop.f32.mrf.mxu0
    %v1078 = vadd.f32 %v649, %v1077
    %1079 = vdwg.mxu0
    %1080 = vmatpush.msra.mxu0 %v617
    %1081 = vmatpush.msra.mxu0 %v592
    %1082 = vmatpush.msra.mxu0 %v567
    %1083 = vmatpush.msra.mxu0 %v542
    %1084 = vmatpush.msra.mxu0 %v517
    %1085 = vmatpush.msra.mxu0 %v492
    %1086 = vmatpush.msra.mxu0 %v467
    %1087 = vmatpush.msra.mxu0 %v442
    %1088 = vmatpush.msra.mxu0 %v417
    %1089 = vmatpush.msra.mxu0 %v392
    %1090 = vmatpush.msra.mxu0 %v367
    %1091 = vmatpush.msra.mxu0 %v342
    %1092 = vmatpush.msra.mxu0 %v317
    %1093 = vmatpush.msra.mxu0 %v292
    %1094 = vmatpush.msra.mxu0 %v267
    %1095 = vmatpush.msra.mxu0 %v242
    %1096 = vmatmul.f32.gmra.mxu0 %v221
    %v1097 = vpop.f32.mrf.mxu0
    %v1098 = vadd.f32 %v650, %v1097
    %1099 = vdwg.mxu0
    %1100 = vmatpush.msra.mxu0 %v618
    %1101 = vmatpush.msra.mxu0 %v593
    %1102 = vmatpush.msra.mxu0 %v568
    %1103 = vmatpush.msra.mxu0 %v543
    %1104 = vmatpush.msra.mxu0 %v518
    %1105 = vmatpush.msra.mxu0 %v493
    %1106 = vmatpush.msra.mxu0 %v468
    %1107 = vmatpush.msra.mxu0 %v443
    %1108 = vmatpush.msra.mxu0 %v418
    %1109 = vmatpush.msra.mxu0 %v393
    %1110 = vmatpush.msra.mxu0 %v368
    %1111 = vmatpush.msra.mxu0 %v343
    %1112 = vmatpush.msra.mxu0 %v318
    %1113 = vmatpush.msra.mxu0 %v293
    %1114 = vmatpush.msra.mxu0 %v268
    %1115 = vmatpush.msra.mxu0 %v243
    %1116 = vmatmul.f32.gmra.mxu0 %v221
    %v1117 = vpop.f32.mrf.mxu0
    %v1118 = vadd.f32 %v651, %v1117
    %1119 = vdwg.mxu0
    %1120 = vmatpush.msra.mxu0 %v619
    %1121 = vmatpush.msra.mxu0 %v594
    %1122 = vmatpush.msra.mxu0 %v569
    %1123 = vmatpush.msra.mxu0 %v544
    %1124 = vmatpush.msra.mxu0 %v519
    %1125 = vmatpush.msra.mxu0 %v494
    %1126 = vmatpush.msra.mxu0 %v469
    %1127 = vmatpush.msra.mxu0 %v444
    %1128 = vmatpush.msra.mxu0 %v419
    %1129 = vmatpush.msra.mxu0 %v394
    %1130 = vmatpush.msra.mxu0 %v369
    %1131 = vmatpush.msra.mxu0 %v344
    %1132 = vmatpush.msra.mxu0 %v319
    %1133 = vmatpush.msra.mxu0 %v294
    %1134 = vmatpush.msra.mxu0 %v269
    %1135 = vmatpush.msra.mxu0 %v244
    %1136 = vmatmul.f32.gmra.mxu0 %v221
    %v1137 = vpop.f32.mrf.mxu0
    %v1138 = vadd.f32 %v652, %v1137
    %1139 = vdwg.mxu0
    %1140 = vmatpush.msra.mxu0 %v620
    %1141 = vmatpush.msra.mxu0 %v595
    %1142 = vmatpush.msra.mxu0 %v570
    %1143 = vmatpush.msra.mxu0 %v545
    %1144 = vmatpush.msra.mxu0 %v520
    %1145 = vmatpush.msra.mxu0 %v495
    %1146 = vmatpush.msra.mxu0 %v470
    %1147 = vmatpush.msra.mxu0 %v445
    %1148 = vmatpush.msra.mxu0 %v420
    %1149 = vmatpush.msra.mxu0 %v395
    %1150 = vmatpush.msra.mxu0 %v370
    %1151 = vmatpush.msra.mxu0 %v345
    %1152 = vmatpush.msra.mxu0 %v320
    %1153 = vmatpush.msra.mxu0 %v295
    %1154 = vmatpush.msra.mxu0 %v270
    %1155 = vmatpush.msra.mxu0 %v245
    %1156 = vmatmul.f32.gmra.mxu0 %v221
    %v1157 = vpop.f32.mrf.mxu0
    %v1158 = vadd.f32 %v653, %v1157
    %1159 = vdwg.mxu0
    %1160 = vmatpush.msra.mxu0 %v621
    %1161 = vmatpush.msra.mxu0 %v596
    %1162 = vmatpush.msra.mxu0 %v571
    %1163 = vmatpush.msra.mxu0 %v546
    %1164 = vmatpush.msra.mxu0 %v521
    %1165 = vmatpush.msra.mxu0 %v496
    %1166 = vmatpush.msra.mxu0 %v471
    %1167 = vmatpush.msra.mxu0 %v446
    %1168 = vmatpush.msra.mxu0 %v421
    %1169 = vmatpush.msra.mxu0 %v396
    %1170 = vmatpush.msra.mxu0 %v371
    %1171 = vmatpush.msra.mxu0 %v346
    %1172 = vmatpush.msra.mxu0 %v321
    %1173 = vmatpush.msra.mxu0 %v296
    %1174 = vmatpush.msra.mxu0 %v271
    %1175 = vmatpush.msra.mxu0 %v246
    %1176 = vmatmul.f32.gmra.mxu0 %v221
    %v1177 = vpop.f32.mrf.mxu0
    %v1178 = vadd.f32 %v654, %v1177
    %1179 = vdwg.mxu0
    %v1180 = vmax.f32 %v698, %v758
    %v1181 = vmax.f32 %v718, %v778
    %v1182 = vmax.f32 %v738, %v798
    %v1183 = vmax.f32 %v1180, %v818
    %v1184 = vmax.f32 %v1181, %v838
    %v1185 = vmax.f32 %v1182, %v858
    %v1186 = vsub.f32 %v698, %v1183
    %v1187 = vsub.f32 %v718, %v1184
    %v1188 = vsub.f32 %v738, %v1185
    %v1189 = vmul.f32 %v1186, 1.442695
    %v1190 = vpow.pop %v1189
    %v1191 = vmul.f32 %v1187, 1.442695
    %v1192 = vpow.pop %v1191
    %v1193 = vmul.f32 %v1188, 1.442695
    %v1194 = vpow.pop %v1193
    %v1195 = vsub.f32 %v758, %v1183
    %v1196 = vsub.f32 %v778, %v1184
    %v1197 = vsub.f32 %v798, %v1185
    %v1198 = vmul.f32 %v1195, 1.442695
    %v1199 = vpow.pop %v1198
    %v1200 = vmul.f32 %v1196, 1.442695
    %v1201 = vpow.pop %v1200
    %v1202 = vmul.f32 %v1197, 1.442695
    %v1203 = vpow.pop %v1202
    %v1204 = vsub.f32 %v818, %v1183
    %v1205 = vsub.f32 %v838, %v1184
    %v1206 = vsub.f32 %v858, %v1185
    %v1207 = vmul.f32 %v1204, 1.442695
    %v1208 = vpow.pop %v1207
    %v1209 = vmul.f32 %v1205, 1.442695
    %v1210 = vpow.pop %v1209
    %v1211 = vmul.f32 %v1206, 1.442695
    %v1212 = vpow.pop %v1211
    %v1213 = vadd.f32 %v1190, %v1199
    %v1214 = vadd.f32 %v1192, %v1201
    %v1215 = vadd.f32 %v1194, %v1203
    %v1216 = vadd.f32 %v1213, %v1208
    %v1217 = vadd.f32 %v1214, %v1210
    %v1218 = vadd.f32 %v1215, %v1212
    %v1219 = vrcp.pop %v1216
    %v1220 = vmul.f32 %v1216, %v1219
    %v1221 = vsub.f32 1.0, %v1220
    %v1222 = vmul.f32 %v1219, %v1221
    %v1223 = vadd.f32 %v1219, %v1222
    %vm1224 = vweird.f32 %v1216
    %vm1225 = vweird.f32 %v1219
    %vm1226 = vmor %vm1224, %vm1225
    %v1227 = vsel %vm1226, %v1219, %v1223
    %v1228 = vand.u32 2147483647, %v1216
    %vm1229 = vcmp.eq.f32.partialorder %v1228, 8.507059e+37
    %v1230 = vand.u32 %v1216, 2147483648
    %v1231 = vor.u32 1.1754944e-38, %v1230
    %v1232 = vsel %vm1229, %v1231, %v1227
    %v1233 = vrcp.pop %v1217
    %v1234 = vmul.f32 %v1217, %v1233
    %v1235 = vsub.f32 1.0, %v1234
    %v1236 = vmul.f32 %v1233, %v1235
    %v1237 = vadd.f32 %v1233, %v1236
    %vm1238 = vweird.f32 %v1217
    %vm1239 = vweird.f32 %v1233
    %vm1240 = vmor %vm1238, %vm1239
    %v1241 = vsel %vm1240, %v1233, %v1237
    %v1242 = vand.u32 2147483647, %v1217
    %vm1243 = vcmp.eq.f32.partialorder %v1242, 8.507059e+37
    %v1244 = vand.u32 %v1217, 2147483648
    %v1245 = vor.u32 1.1754944e-38, %v1244
    %v1246 = vsel %vm1243, %v1245, %v1241
    %v1247 = vrcp.pop %v1218
    %v1248 = vmul.f32 %v1218, %v1247
    %v1249 = vsub.f32 1.0, %v1248
    %v1250 = vmul.f32 %v1247, %v1249
    %v1251 = vadd.f32 %v1247, %v1250
    %vm1252 = vweird.f32 %v1218
    %vm1253 = vweird.f32 %v1247
    %vm1254 = vmor %vm1252, %vm1253
    %v1255 = vsel %vm1254, %v1247, %v1251
    %v1256 = vand.u32 2147483647, %v1218
    %vm1257 = vcmp.eq.f32.partialorder %v1256, 8.507059e+37
    %v1258 = vand.u32 %v1218, 2147483648
    %v1259 = vor.u32 1.1754944e-38, %v1258
    %v1260 = vsel %vm1257, %v1259, %v1255
    %v1261 = vmul.f32 %v1190, %v1232
    %v1262 = vmul.f32 %v1192, %v1246
    %v1263 = vmul.f32 %v1194, %v1260
    %1264 = vst [vmem:[#allocation11] sm:$0xff] %v1261
    %1265 = vst [vmem:[#allocation11 + $0x8] sm:$0xff] %v1262
    %1266 = vst [vmem:[#allocation11 + $0x10] sm:$0xff] %v1263
    %v1267 = vmul.f32 %v1199, %v1232
    %v1268 = vmul.f32 %v1201, %v1246
    %v1269 = vmul.f32 %v1203, %v1260
    %1270 = vst [vmem:[#allocation11 + $0x18] sm:$0xff] %v1267
    %1271 = vst [vmem:[#allocation11 + $0x20] sm:$0xff] %v1268
    %1272 = vst [vmem:[#allocation11 + $0x28] sm:$0xff] %v1269
    %v1273 = vmul.f32 %v1208, %v1232
    %v1274 = vmul.f32 %v1210, %v1246
    %v1275 = vmul.f32 %v1212, %v1260
    %1276 = vst [vmem:[#allocation11 + $0x30] sm:$0xff] %v1273
    %1277 = vst [vmem:[#allocation11 + $0x38] sm:$0xff] %v1274
    %1278 = vst [vmem:[#allocation11 + $0x40] sm:$0xff] %v1275
    %1279 = vst [vmem:[#allocation11 + $0x48] sm:$0xff] %v878
    %1280 = vst [vmem:[#allocation11 + $0x50] sm:$0xff] %v898
    %1281 = vst [vmem:[#allocation11 + $0x58] sm:$0xff] %v918
    %1282 = vst [vmem:[#allocation11 + $0x60] sm:$0xff] %v938
    %1283 = vst [vmem:[#allocation11 + $0x68] sm:$0xff] %v958
    %v1284 = vsub.f32 0.0, %v978
    %v1285 = vsub.f32 0.0, %v998
    %v1286 = vsub.f32 0.0, %v1018
    %v1287 = vsub.f32 0.0, %v1038
    %v1288 = vsub.f32 0.0, %v1058
    %v1289 = vmul.f32 %v1284, 1.442695
    %v1290 = vpow.pop %v1289
    %v1291 = vmul.f32 %v1285, 1.442695
    %v1292 = vpow.pop %v1291
    %v1293 = vmul.f32 %v1286, 1.442695
    %v1294 = vpow.pop %v1293
    %v1295 = vmul.f32 %v1287, 1.442695
    %v1296 = vpow.pop %v1295
    %v1297 = vmul.f32 %v1288, 1.442695
    %v1298 = vpow.pop %v1297
    %v1299 = vadd.f32 %v1290, 1.0
    %v1300 = vadd.f32 %v1292, 1.0
    %v1301 = vadd.f32 %v1294, 1.0
    %v1302 = vadd.f32 %v1296, 1.0
    %v1303 = vadd.f32 %v1298, 1.0
    %v1304 = vrcp.pop %v1299
    %v1305 = vmul.f32 %v1299, %v1304
    %v1306 = vsub.f32 1.0, %v1305
    %v1307 = vmul.f32 %v1304, %v1306
    %v1308 = vadd.f32 %v1304, %v1307
    %vm1309 = vweird.f32 %v1299
    %vm1310 = vweird.f32 %v1304
    %vm1311 = vmor %vm1309, %vm1310
    %v1312 = vsel %vm1311, %v1304, %v1308
    %v1313 = vand.u32 2147483647, %v1299
    %vm1314 = vcmp.eq.f32.partialorder %v1313, 8.507059e+37
    %v1315 = vand.u32 %v1299, 2147483648
    %v1316 = vor.u32 1.1754944e-38, %v1315
    %v1317 = vsel %vm1314, %v1316, %v1312
    %v1318 = vmul.f32 1.0, %v1317
    %v1319 = vrcp.pop %v1300
    %v1320 = vmul.f32 %v1300, %v1319
    %v1321 = vsub.f32 1.0, %v1320
    %v1322 = vmul.f32 %v1319, %v1321
    %v1323 = vadd.f32 %v1319, %v1322
    %vm1324 = vweird.f32 %v1300
    %vm1325 = vweird.f32 %v1319
    %vm1326 = vmor %vm1324, %vm1325
    %v1327 = vsel %vm1326, %v1319, %v1323
    %v1328 = vand.u32 2147483647, %v1300
    %vm1329 = vcmp.eq.f32.partialorder %v1328, 8.507059e+37
    %v1330 = vand.u32 %v1300, 2147483648
    %v1331 = vor.u32 1.1754944e-38, %v1330
    %v1332 = vsel %vm1329, %v1331, %v1327
    %v1333 = vmul.f32 1.0, %v1332
    %v1334 = vrcp.pop %v1301
    %v1335 = vmul.f32 %v1301, %v1334
    %v1336 = vsub.f32 1.0, %v1335
    %v1337 = vmul.f32 %v1334, %v1336
    %v1338 = vadd.f32 %v1334, %v1337
    %vm1339 = vweird.f32 %v1301
    %vm1340 = vweird.f32 %v1334
    %vm1341 = vmor %vm1339, %vm1340
    %v1342 = vsel %vm1341, %v1334, %v1338
    %v1343 = vand.u32 2147483647, %v1301
    %vm1344 = vcmp.eq.f32.partialorder %v1343, 8.507059e+37
    %v1345 = vand.u32 %v1301, 2147483648
    %v1346 = vor.u32 1.1754944e-38, %v1345
    %v1347 = vsel %vm1344, %v1346, %v1342
    %v1348 = vmul.f32 1.0, %v1347
    %v1349 = vrcp.pop %v1302
    %v1350 = vmul.f32 %v1302, %v1349
    %v1351 = vsub.f32 1.0, %v1350
    %v1352 = vmul.f32 %v1349, %v1351
    %v1353 = vadd.f32 %v1349, %v1352
    %vm1354 = vweird.f32 %v1302
    %vm1355 = vweird.f32 %v1349
    %vm1356 = vmor %vm1354, %vm1355
    %v1357 = vsel %vm1356, %v1349, %v1353
    %v1358 = vand.u32 2147483647, %v1302
    %vm1359 = vcmp.eq.f32.partialorder %v1358, 8.507059e+37
    %v1360 = vand.u32 %v1302, 2147483648
    %v1361 = vor.u32 1.1754944e-38, %v1360
    %v1362 = vsel %vm1359, %v1361, %v1357
    %v1363 = vmul.f32 1.0, %v1362
    %v1364 = vrcp.pop %v1303
    %v1365 = vmul.f32 %v1303, %v1364
    %v1366 = vsub.f32 1.0, %v1365
    %v1367 = vmul.f32 %v1364, %v1366
    %v1368 = vadd.f32 %v1364, %v1367
    %vm1369 = vweird.f32 %v1303
    %vm1370 = vweird.f32 %v1364
    %vm1371 = vmor %vm1369, %vm1370
    %v1372 = vsel %vm1371, %v1364, %v1368
    %v1373 = vand.u32 2147483647, %v1303
    %vm1374 = vcmp.eq.f32.partialorder %v1373, 8.507059e+37
    %v1375 = vand.u32 %v1303, 2147483648
    %v1376 = vor.u32 1.1754944e-38, %v1375
    %v1377 = vsel %vm1374, %v1376, %v1372
    %v1378 = vmul.f32 1.0, %v1377
    %v1379 = vmul.f32 %v1318, 0.8
    %v1380 = vmul.f32 %v1333, 0.8
    %v1381 = vmul.f32 %v1348, 0.8
    %v1382 = vmul.f32 %v1363, 0.8
    %v1383 = vmul.f32 %v1378, 0.8
    %1384 = vst [vmem:[#allocation11 + $0x70] sm:$0xff] %v1379
    %1385 = vst [vmem:[#allocation11 + $0x78] sm:$0xff] %v1380
    %1386 = vst [vmem:[#allocation11 + $0x80] sm:$0xff] %v1381
    %1387 = vst [vmem:[#allocation11 + $0x88] sm:$0xff] %v1382
    %1388 = vst [vmem:[#allocation11 + $0x90] sm:$0xff] %v1383
    %1389 = vst [vmem:[#allocation11 + $0x98] sm:$0xff] %v1078
    %1390 = vst [vmem:[#allocation11 + $0xa0] sm:$0xff] %v1098
    %1391 = vst [vmem:[#allocation11 + $0xa8] sm:$0xff] %v1118
    %v1392 = vmax.f32 %v1138, 0.0
    %v1393 = vmax.f32 %v1158, 0.0
    %v1394 = vmax.f32 %v1178, 0.0
    %v1395 = vand.u32 2147483647, %v1138
    %v1396 = vand.u32 2147483647, %v1158
    %v1397 = vand.u32 2147483647, %v1178
    %v1398 = vsub.f32 0.0, %v1395
    %v1399 = vsub.f32 0.0, %v1396
    %v1400 = vsub.f32 0.0, %v1397
    %v1401 = vmul.f32 %v1398, 1.442695
    %v1402 = vpow.pop %v1401
    %v1403 = vmul.f32 %v1399, 1.442695
    %v1404 = vpow.pop %v1403
    %v1405 = vmul.f32 %v1400, 1.442695
    %v1406 = vpow.pop %v1405
    %v1407 = vadd.f32 %v1402, 1.0
    %v1408 = vlog2.pop %v1407
    %v1409 = vmul.f32 %v1408, 0.6931472
    %v1410 = vmul.f32 -0.5, %v1402
    %v1411 = vadd.f32 %v1410, 1.0
    %v1412 = vmul.f32 %v1411, %v1402
    %v1413 = vand.u32 2147483647, %v1402
    %vm1414 = vcmp.lt.f32.partialorder %v1413, 0.0004427343
    %v1415 = vsel %vm1414, %v1412, %v1409
    %v1416 = vadd.f32 %v1404, 1.0
    %v1417 = vlog2.pop %v1416
    %v1418 = vmul.f32 %v1417, 0.6931472
    %v1419 = vmul.f32 -0.5, %v1404
    %v1420 = vadd.f32 %v1419, 1.0
    %v1421 = vmul.f32 %v1420, %v1404
    %v1422 = vand.u32 2147483647, %v1404
    %vm1423 = vcmp.lt.f32.partialorder %v1422, 0.0004427343
    %v1424 = vsel %vm1423, %v1421, %v1418
    %v1425 = vadd.f32 %v1406, 1.0
    %v1426 = vlog2.pop %v1425
    %v1427 = vmul.f32 %v1426, 0.6931472
    %v1428 = vmul.f32 -0.5, %v1406
    %v1429 = vadd.f32 %v1428, 1.0
    %v1430 = vmul.f32 %v1429, %v1406
    %v1431 = vand.u32 2147483647, %v1406
    %vm1432 = vcmp.lt.f32.partialorder %v1431, 0.0004427343
    %v1433 = vsel %vm1432, %v1430, %v1427
    %v1434 = vadd.f32 %v1392, %v1415
    %v1435 = vadd.f32 %v1393, %v1424
    %v1436 = vadd.f32 %v1394, %v1433
    %1437 = vst [vmem:[#allocation11 + $0xb0] sm:$0xff] %v1434
    %1438 = vst [vmem:[#allocation11 + $0xb8] sm:$0xff] %v1435
    %1439 = vst [vmem:[#allocation11 + $0xc0] sm:$0xff] %v1436
    // Predicated region
    $region42: #{tpu_custom_call.1} parent=1 // pred_check
      _
    $region43: #{tpu_custom_call.1} parent=1 // pred_check_branch
      %1441 = sbr.rel (0) target = $region45
    $region44: #{tpu_custom_call.1} parent=1 // pred_region
      %1443 = vsyncadd [#allocation4], 0
      %s1445 = sshll.u32 [#allocation11], 4
      %s1446 = int_to_ptr.vmem [resolvable:$true] %s1445
      %s1447 = sshll.u32 %s5, 4
      %s1448 = int_to_ptr.hbm [resolvable:$true] %s1447
      %1450 = dma.vmem_to_hbm [thread:$0]  %s1446, 3200, %s1448, [#allocation4]
    $region45: #{tpu_custom_call.1} parent=1 // pred_fallthru
      _
    // Predicated region
    $region46: #{tpu_custom_call.1} parent=1 // pred_check
      _
    $region47: #{tpu_custom_call.1} parent=1 // pred_check_branch
      %1452 = sbr.rel (0) target = $region49
    $region48: #{tpu_custom_call.1} parent=1 // pred_region
      %1454 = dma.done [#allocation4], 3200
    $region49: #{tpu_custom_call.1} parent=1 // pred_fallthru
      _
    %1455 = vsyncpa [#allocation3], 1
    %1456 = vsyncpa [#allocation6], 1
    %1457 = vsyncpa [#allocation9], 1
    %1458 = vsyncpa [#allocation4], 1

</llo_original>
